<compile_context>
chip_gen: v7x
topology: tpu7x:2x2x1
jax: 0.10.0
libtpu: 0.0.40
codegen_flags: <defaults>
</compile_context>

<pallas_src>
import functools

import jax
import jax.numpy as jnp
from jax import lax
from jax.experimental import pallas as pl
from jax.experimental.pallas import tpu as pltpu


def _linear_self_attn_kernel(x_ref, wqkv_ref, bqkv_ref, wout_ref, bout_ref,
                             st_ref, o_ref, *, embed_dim: int, total_batch: int):
    C = embed_dim
    bblk, _, L = x_ref.shape
    P = st_ref.shape[0]
    Cq = wqkv_ref.shape[0]

    # ---- Hoisted out of the batch loop: weights, segment matrix, and bias
    #      lane-broadcasts (JAX does not CSE broadcast_in_dim). ----
    w_qkv = wqkv_ref[...]                                   # (Cq, C)  bf16
    w_out = wout_ref[...]                                   # (C, C)   bf16
    st = st_ref[...]                                        # (P, L)   f32 (0/1)
    b_qkv = jnp.broadcast_to(bqkv_ref[...], (Cq, L))        # (Cq, L)  f32
    b_out = jnp.broadcast_to(bout_ref[...], (C, L))         # (C, L)   f32

    trans_b = (((1,), (1,)), ((), ()))                      # contract lane axes: A @ B^T

    # Last block of the grid may be partial.
    n_valid = jnp.minimum(bblk, total_batch - pl.program_id(0) * bblk)

    def body(bi, carry):
        x = x_ref[bi]                                       # (C, L) bf16

        # Fused qkv 1x1 conv. Rows ordered [k | v | q | pad] so the k / v
        # slices below are 8-sublane-aligned free views. bf16 in, f32 acc.
        qkv = jnp.dot(w_qkv, x, preferred_element_type=jnp.float32) + b_qkv  # (Cq, L)
        k = qkv[0:C, :]                                     # (C, L)
        v = qkv[C:2 * C, :]                                 # (C, L)
        q = qkv[2 * C:2 * C + 1, :]                         # (1, L)

        # Per-patch softmax over the fused lane axis, stabilized with a
        # per-segment max (masked cross-lane max + exact 0/1-indicator
        # broadcast back to lanes).
        masked = jnp.where(st > 0.0, q, jnp.float32(-1e30))              # (P, L)
        m_seg = jnp.max(masked, axis=-1, keepdims=True)                  # (P, 1)
        m_lane = jnp.sum(st * m_seg, axis=0, keepdims=True)              # (1, L), exact
        e = jnp.exp(q - m_lane)                                          # (1, L)
        denom = lax.dot_general(e, st, trans_b,
                                preferred_element_type=jnp.float32)      # (1, P)
        inv = pl.reciprocal(denom, approx=True)                          # (1, P)
        # TODO(synk): attn_drop / out_drop are inference-mode identities here.

        # Context per segment; softmax scores never materialized (exact):
        #   ctx = (sum_seg k * e) * (1 / sum_seg e)
        ctx = lax.dot_general(k * e, st, trans_b,
                              preferred_element_type=jnp.float32) * inv  # (C, P)
        ctx_b = jnp.dot(ctx, st, preferred_element_type=jnp.float32)     # (C, L)

        out = jnp.maximum(v, 0.0) * ctx_b                                # (C, L) f32

        # Output 1x1 conv (bf16 operands, f32 accumulation).
        o = jnp.dot(w_out, out.astype(jnp.bfloat16),
                    preferred_element_type=jnp.float32) + b_out          # (C, L)
        o_ref[bi] = o.astype(o_ref.dtype)
        return carry

    lax.fori_loop(0, n_valid, body, 0)


def linear_self_attention(x, w_qkv, b_qkv, w_out, b_out):
    """x: (B, C, P, N). w_qkv: (1+2C, C), b_qkv: (1+2C,), w_out: (C, C), b_out: (C,)."""
    B, C, P, N = x.shape
    L = P * N
    Cq = ((2 * C + 1 + 7) // 8) * 8                 # k | v | q | zero pad rows
    pad = Cq - (2 * C + 1)

    # Metadata-only reshape of trailing contiguous dims; bf16 halves the input
    # DMA and feeds the MXU natively (f32 accumulation in the kernel).
    x2 = x.reshape(B, C, L).astype(jnp.bfloat16)

    # Reorder qkv rows to [k(0:C), v(C:2C), q, pad] so the kernel's k/v slices
    # start on 8-sublane boundaries (free views).
    w_kvq = jnp.concatenate(
        [w_qkv[1:1 + C], w_qkv[1 + C:1 + 2 * C], w_qkv[0:1],
         jnp.zeros((pad, C), w_qkv.dtype)], axis=0).astype(jnp.bfloat16)      # (Cq, C)
    b_kvq = jnp.concatenate(
        [b_qkv[1:1 + C], b_qkv[1 + C:1 + 2 * C], b_qkv[0:1],
         jnp.zeros((pad,), b_qkv.dtype)]).reshape(Cq, 1).astype(jnp.float32)  # (Cq, 1)
    w_out2 = w_out.astype(jnp.bfloat16)                                       # (C, C)
    b_out2 = b_out.reshape(C, 1).astype(jnp.float32)                          # (C, 1)

    # Segment indicator: st[p, l] = 1 iff lane l belongs to patch p.
    seg = jnp.repeat(jnp.arange(P, dtype=jnp.int32), N)
    st = (jnp.arange(P, dtype=jnp.int32)[:, None] == seg[None, :]).astype(jnp.float32)

    # ---- Generation-aware batch blocking + VMEM budget ----
    out_dtype = x.dtype
    out_bytes = jnp.dtype(out_dtype).itemsize
    try:
        vmem_cap = int(pltpu.get_tpu_info().vmem_capacity_bytes)
    except Exception:
        vmem_cap = 64 * 1024 * 1024                 # conservative: v7x per-TC VMEM
    # Double-buffered in/out blocks capped at ~40% of VMEM (intermediates,
    # weights and compiler scratch use the rest).
    per_batch_bytes = C * L * (2 * 2 + 2 * out_bytes)
    bblk = max(1, min(B, int(0.40 * vmem_cap) // max(per_batch_bytes, 1)))
    # Keep >= 2 grid steps when possible so v7x's two TensorCores both get work.
    if B >= 2:
        bblk = min(bblk, pl.cdiv(B, 2))
    grid = (pl.cdiv(B, bblk),)

    # Explicit VMEM limit derived from the block math (not a blanket number).
    interm_bytes = (Cq * L + 6 * C * L) * 4         # f32 qkv + temporaries + bias bcasts
    weights_bytes = (Cq * C + C * C) * 2 + (Cq + C) * 4 + P * L * 4
    need = 2 * bblk * C * L * (2 + out_bytes) + 2 * weights_bytes + interm_bytes
    vmem_limit = int(min(max(need + (8 << 20), 16 << 20), int(0.9 * vmem_cap)))

    flops = 2 * B * L * (Cq * C + C * C) + 2 * B * L * P * (C + 3)
    bytes_accessed = B * C * L * (2 + out_bytes) + weights_bytes
    cost = pl.CostEstimate(flops=flops, transcendentals=B * L,
                           bytes_accessed=bytes_accessed)

    kernel = functools.partial(_linear_self_attn_kernel, embed_dim=C, total_batch=B)

    out2 = pl.pallas_call(
        kernel,
        out_shape=jax.ShapeDtypeStruct((B, C, L), out_dtype),
        grid_spec=pltpu.PrefetchScalarGridSpec(
            num_scalar_prefetch=0,
            grid=grid,
            in_specs=[
                pl.BlockSpec((bblk, C, L), lambda g: (g, 0, 0)),
                pl.BlockSpec((Cq, C), lambda g: (0, 0)),
                pl.BlockSpec((Cq, 1), lambda g: (0, 0)),
                pl.BlockSpec((C, C), lambda g: (0, 0)),
                pl.BlockSpec((C, 1), lambda g: (0, 0)),
                pl.BlockSpec((P, L), lambda g: (0, 0)),
            ],
            out_specs=pl.BlockSpec((bblk, C, L), lambda g: (g, 0, 0)),
        ),
        compiler_params=pltpu.CompilerParams(
            dimension_semantics=("parallel",),
            vmem_limit_bytes=vmem_limit),
        cost_estimate=cost,
    )(x2, w_kvq, b_kvq, w_out2, b_out2, st)

    return out2.reshape(B, C, P, N)


def _reference(x, w_qkv, b_qkv, w_out, b_out):
    """Plain-JAX f32 reference mirroring the PyTorch forward (eval mode)."""
    C = x.shape[1]
    qkv = jnp.einsum("oc,bcpn->bopn", w_qkv, x) + b_qkv[None, :, None, None]
    q, k, v = qkv[:, :1], qkv[:, 1:1 + C], qkv[:, 1 + C:]
    scores = jax.nn.softmax(q, axis=-1)
    ctx = jnp.sum(k * scores, axis=-1, keepdims=True)
    out = jax.nn.relu(v) * ctx
    out = jnp.einsum("oc,bcpn->bopn", w_out, out) + b_out[None, :, None, None]
    return out


if __name__ == "__main__":
    B, C, P, N = 4, 32, 4, 256   # batch, embed_dim, patch-dim, seq-dim (L = P*N lane-dense)

    key = jax.random.PRNGKey(0)
    kx, k1, k2, k3, k4 = jax.random.split(key, 5)

    x = jax.random.normal(kx, (B, C, P, N), dtype=jnp.float32)

    # Deterministic synthetic parameters (1x1 conv weights squeezed to 2D).
    bound = 1.0 / (C ** 0.5)
    w_qkv = jax.random.uniform(k1, (1 + 2 * C, C), jnp.float32, -bound, bound)
    b_qkv = jax.random.uniform(k2, (1 + 2 * C,), jnp.float32, -bound, bound)
    w_out = jax.random.uniform(k3, (C, C), jnp.float32, -bound, bound)
    b_out = jax.random.uniform(k4, (C,), jnp.float32, -bound, bound)

    y = linear_self_attention(x, w_qkv, b_qkv, w_out, b_out)
    y = jax.block_until_ready(y)

    y_ref = _reference(x, w_qkv, b_qkv, w_out, b_out)
    assert y.shape == (B, C, P, N)
    # Relaxed tolerance: bf16 matmul operands (f32 accumulation) + EUP approx
    # reciprocal in the softmax denominator; f32 reference is the ground truth.
    assert jnp.allclose(y, y_ref, atol=3e-2, rtol=3e-2), "mismatch vs reference"

    print("KERNEL_OK")
</pallas_src>

<mosaic_0001>
module attributes {stable_mosaic.version = 11 : i64} {
  func.func @_linear_self_attn_kernel(%arg0: i32, %arg1: memref<2x32x1024xbf16, #tpu.memory_space<vmem>>, %arg2: memref<72x32xbf16, #tpu.memory_space<vmem>>, %arg3: memref<72x1xf32, #tpu.memory_space<vmem>>, %arg4: memref<32x32xbf16, #tpu.memory_space<vmem>>, %arg5: memref<32x1xf32, #tpu.memory_space<vmem>>, %arg6: memref<4x1024xf32, #tpu.memory_space<vmem>>, %arg7: memref<2x32x1024xf32, #tpu.memory_space<vmem>>) attributes {dimension_semantics = [#tpu.dimension_semantics<parallel>], iteration_bounds = array<i64: 2>, scalar_prefetch = 0 : i64, scratch_operands = 0 : i64, tpu.core_type = #tpu.core_type<tc>, window_params = [{transform_indices = @transform_0, window_bounds = array<i64: 2, 32, 1024>}, {pipeline_mode = #tpu.pipeline_mode<synchronous>, transform_indices = @transform_1, window_bounds = array<i64: 72, 32>}, {pipeline_mode = #tpu.pipeline_mode<synchronous>, transform_indices = @transform_2, window_bounds = array<i64: 72, 1>}, {pipeline_mode = #tpu.pipeline_mode<synchronous>, transform_indices = @transform_3, window_bounds = array<i64: 32, 32>}, {pipeline_mode = #tpu.pipeline_mode<synchronous>, transform_indices = @transform_4, window_bounds = array<i64: 32, 1>}, {pipeline_mode = #tpu.pipeline_mode<synchronous>, transform_indices = @transform_5, window_bounds = array<i64: 4, 1024>}, {transform_indices = @transform_6, window_bounds = array<i64: 2, 32, 1024>}]} {
    %c0 = arith.constant 0 : index
    %c0_0 = arith.constant 0 : index
    %0 = vector.load %arg2[%c0, %c0_0] : memref<72x32xbf16, #tpu.memory_space<vmem>>, vector<72x32xbf16>
    %c0_1 = arith.constant 0 : index
    %c0_2 = arith.constant 0 : index
    %1 = vector.load %arg4[%c0_1, %c0_2] : memref<32x32xbf16, #tpu.memory_space<vmem>>, vector<32x32xbf16>
    %c0_3 = arith.constant 0 : index
    %c0_4 = arith.constant 0 : index
    %2 = vector.load %arg6[%c0_3, %c0_4] : memref<4x1024xf32, #tpu.memory_space<vmem>>, vector<4x1024xf32>
    %c0_5 = arith.constant 0 : index
    %c0_6 = arith.constant 0 : index
    %3 = vector.load %arg3[%c0_5, %c0_6] : memref<72x1xf32, #tpu.memory_space<vmem>>, vector<72x1xf32>
    %4 = vector.shape_cast %3 : vector<72x1xf32> to vector<72x1xf32>
    %5 = vector.broadcast %4 : vector<72x1xf32> to vector<72x1024xf32>
    %c0_7 = arith.constant 0 : index
    %c0_8 = arith.constant 0 : index
    %6 = vector.load %arg5[%c0_7, %c0_8] : memref<32x1xf32, #tpu.memory_space<vmem>>, vector<32x1xf32>
    %7 = vector.shape_cast %6 : vector<32x1xf32> to vector<32x1xf32>
    %8 = vector.broadcast %7 : vector<32x1xf32> to vector<32x1024xf32>
    %c2_i32 = arith.constant 2 : i32
    %9 = arith.muli %arg0, %c2_i32 : i32
    %c4_i32 = arith.constant 4 : i32
    %10 = arith.subi %c4_i32, %9 : i32
    %c2_i32_9 = arith.constant 2 : i32
    %11 = arith.minsi %c2_i32_9, %10 : i32
    %c0_i32 = arith.constant 0 : i32
    %c0_i32_10 = arith.constant 0 : i32
    %12 = arith.subi %11, %c0_i32_10 : i32
    %13 = arith.addi %c0_i32_10, %12 : i32
    %c1_i32 = arith.constant 1 : i32
    scf.for %arg8 = %c0_i32_10 to %13 step %c1_i32  : i32 {
      %14 = arith.index_cast %arg8 : i32 to index
      %c0_11 = arith.constant 0 : index
      %c0_12 = arith.constant 0 : index
      %15 = vector.load %arg1[%14, %c0_11, %c0_12] : memref<2x32x1024xbf16, #tpu.memory_space<vmem>>, vector<1x32x1024xbf16>
      %16 = vector.shape_cast %15 : vector<1x32x1024xbf16> to vector<32x1024xbf16>
      %cst = arith.constant dense<0.000000e+00> : vector<72x1024xf32>
      %17 = tpu.matmul %0, %16, %cst {dimension_numbers = #tpu.dot_dimension_numbers<[1], [0], [0], [1], [0, 0, 1, 1], [], []>} : vector<72x32xbf16>, vector<32x1024xbf16>, vector<72x1024xf32> -> vector<72x1024xf32>
      %18 = arith.addf %17, %5 : vector<72x1024xf32>
      %19 = vector.extract_strided_slice %18 {offsets = [0, 0], sizes = [32, 1024], strides = [1, 1]} : vector<72x1024xf32> to vector<32x1024xf32>
      %20 = vector.extract_strided_slice %18 {offsets = [32, 0], sizes = [32, 1024], strides = [1, 1]} : vector<72x1024xf32> to vector<32x1024xf32>
      %21 = vector.extract_strided_slice %18 {offsets = [64, 0], sizes = [1, 1024], strides = [1, 1]} : vector<72x1024xf32> to vector<1x1024xf32>
      %cst_13 = arith.constant 0.000000e+00 : f32
      %22 = vector.broadcast %cst_13 : f32 to vector<4x1024xf32>
      %23 = arith.cmpf ogt, %2, %22 : vector<4x1024xf32>
      %cst_14 = arith.constant -1.000000e+30 : f32
      %24 = vector.shape_cast %21 : vector<1x1024xf32> to vector<1x1024xf32>
      %25 = vector.broadcast %24 : vector<1x1024xf32> to vector<4x1024xf32>
      %26 = vector.broadcast %cst_14 : f32 to vector<4x1024xf32>
      %27 = arith.select %23, %25, %26 : vector<4x1024xi1>, vector<4x1024xf32>
      %cst_15 = arith.constant dense<0xFF800000> : vector<4xf32>
      %28 = vector.multi_reduction <maximumf>, %27, %cst_15 [1] : vector<4x1024xf32> to vector<4xf32>
      %29 = vector.shape_cast %28 : vector<4xf32> to vector<4x1xf32>
      %30 = vector.broadcast %29 : vector<4x1xf32> to vector<4x1024xf32>
      %31 = arith.mulf %2, %30 : vector<4x1024xf32>
      %cst_16 = arith.constant dense<0.000000e+00> : vector<1024xf32>
      %32 = vector.multi_reduction <add>, %31, %cst_16 [0] : vector<4x1024xf32> to vector<1024xf32>
      %33 = vector.shape_cast %32 : vector<1024xf32> to vector<1x1024xf32>
      %34 = arith.subf %21, %33 : vector<1x1024xf32>
      %35 = math.exp %34 : vector<1x1024xf32>
      %cst_17 = arith.constant dense<0.000000e+00> : vector<1x4xf32>
      %36 = tpu.matmul %35, %2, %cst_17 {dimension_numbers = #tpu.dot_dimension_numbers<[1], [1], [0], [0], [0, 0, 1, 0], [], []>} : vector<1x1024xf32>, vector<4x1024xf32>, vector<1x4xf32> -> vector<1x4xf32>
      %37 = tpu.reciprocal %36 {approx = true} : vector<1x4xf32> -> vector<1x4xf32>
      %38 = vector.broadcast %35 : vector<1x1024xf32> to vector<32x1024xf32>
      %39 = arith.mulf %19, %38 : vector<32x1024xf32>
      %cst_18 = arith.constant dense<0.000000e+00> : vector<32x4xf32>
      %40 = tpu.matmul %39, %2, %cst_18 {dimension_numbers = #tpu.dot_dimension_numbers<[1], [1], [0], [0], [0, 0, 1, 0], [], []>} : vector<32x1024xf32>, vector<4x1024xf32>, vector<32x4xf32> -> vector<32x4xf32>
      %41 = vector.broadcast %37 : vector<1x4xf32> to vector<32x4xf32>
      %42 = arith.mulf %40, %41 : vector<32x4xf32>
      %cst_19 = arith.constant dense<0.000000e+00> : vector<32x1024xf32>
      %43 = tpu.matmul %42, %2, %cst_19 {dimension_numbers = #tpu.dot_dimension_numbers<[1], [0], [0], [1], [0, 0, 1, 1], [], []>} : vector<32x4xf32>, vector<4x1024xf32>, vector<32x1024xf32> -> vector<32x1024xf32>
      %cst_20 = arith.constant 0.000000e+00 : f32
      %44 = vector.broadcast %cst_20 : f32 to vector<32x1024xf32>
      %45 = arith.maximumf %20, %44 : vector<32x1024xf32>
      %46 = arith.mulf %45, %43 : vector<32x1024xf32>
      %47 = arith.truncf %46 : vector<32x1024xf32> to vector<32x1024xbf16>
      %cst_21 = arith.constant dense<0.000000e+00> : vector<32x1024xf32>
      %48 = tpu.matmul %1, %47, %cst_21 {dimension_numbers = #tpu.dot_dimension_numbers<[1], [0], [0], [1], [0, 0, 1, 1], [], []>} : vector<32x32xbf16>, vector<32x1024xbf16>, vector<32x1024xf32> -> vector<32x1024xf32>
      %49 = arith.addf %48, %8 : vector<32x1024xf32>
      %50 = arith.index_cast %arg8 : i32 to index
      %c0_22 = arith.constant 0 : index
      %c0_23 = arith.constant 0 : index
      %51 = vector.load %arg7[%50, %c0_22, %c0_23] : memref<2x32x1024xf32, #tpu.memory_space<vmem>>, vector<1x32x1024xf32>
      %52 = vector.shape_cast %51 : vector<1x32x1024xf32> to vector<32x1024xf32>
      %53 = vector.shape_cast %49 : vector<32x1024xf32> to vector<1x32x1024xf32>
      tpu.vector_store %arg7[%50, %c0_22, %c0_23], %53 {strides = array<i32>} : memref<2x32x1024xf32, #tpu.memory_space<vmem>>, vector<1x32x1024xf32>,
    }
    return
  }
  func.func @transform_0(%arg0: i32) -> (i32, i32, i32) {
    %c0_i32 = arith.constant 0 : i32
    %c0_i32_0 = arith.constant 0 : i32
    %c0_i32_1 = arith.constant 0 : i32
    return %arg0, %c0_i32, %c0_i32_0 : i32, i32, i32
  }
  func.func @transform_1(%arg0: i32) -> (i32, i32) {
    %c0_i32 = arith.constant 0 : i32
    %c0_i32_0 = arith.constant 0 : i32
    %c0_i32_1 = arith.constant 0 : i32
    return %c0_i32, %c0_i32_0 : i32, i32
  }
  func.func @transform_2(%arg0: i32) -> (i32, i32) {
    %c0_i32 = arith.constant 0 : i32
    %c0_i32_0 = arith.constant 0 : i32
    %c0_i32_1 = arith.constant 0 : i32
    return %c0_i32, %c0_i32_0 : i32, i32
  }
  func.func @transform_3(%arg0: i32) -> (i32, i32) {
    %c0_i32 = arith.constant 0 : i32
    %c0_i32_0 = arith.constant 0 : i32
    %c0_i32_1 = arith.constant 0 : i32
    return %c0_i32, %c0_i32_0 : i32, i32
  }
  func.func @transform_4(%arg0: i32) -> (i32, i32) {
    %c0_i32 = arith.constant 0 : i32
    %c0_i32_0 = arith.constant 0 : i32
    %c0_i32_1 = arith.constant 0 : i32
    return %c0_i32, %c0_i32_0 : i32, i32
  }
  func.func @transform_5(%arg0: i32) -> (i32, i32) {
    %c0_i32 = arith.constant 0 : i32
    %c0_i32_0 = arith.constant 0 : i32
    %c0_i32_1 = arith.constant 0 : i32
    return %c0_i32, %c0_i32_0 : i32, i32
  }
  func.func @transform_6(%arg0: i32) -> (i32, i32, i32) {
    %c0_i32 = arith.constant 0 : i32
    %c0_i32_0 = arith.constant 0 : i32
    %c0_i32_1 = arith.constant 0 : i32
    return %arg0, %c0_i32, %c0_i32_0 : i32, i32, i32
  }
}

</mosaic_0001>

<llo_original>
// kernel: tpu_custom_call.1
$region0: #{tpu_custom_call.1}
  #allocation0 [shape = 'u32[]', space=smem, size = 0x4, offset = 0x4, fixed_abs, tag = 'smem constant byte address 0x4 - core index']
  #allocation1 [shape = 'u32[144,128]{1,0:T(1,128)}', space=vmem, size = 0x12000, scoped, tag = 'internal scratch']
  %s0 = inlined_call_operand.hbm [shape: bf16[4,32,1024], index: 0, kind: input, shape index: {}]
  %s1 = inlined_call_operand.vmem [shape: bf16[72,32], index: 1, kind: input, shape index: {}]
  %s2 = inlined_call_operand.vmem [shape: f32[72,1], index: 2, kind: input, shape index: {}]
  %s3 = inlined_call_operand.vmem [shape: bf16[32,32], index: 3, kind: input, shape index: {}]
  %s4 = inlined_call_operand.vmem [shape: f32[32,1], index: 4, kind: input, shape index: {}]
  %s5 = inlined_call_operand.vmem [shape: f32[4,1024], index: 5, kind: input, shape index: {}]
  %s6 = inlined_call_operand.hbm [shape: f32[4,32,1024], index: 6, kind: output, shape index: {}]
  %s7 = sld [smem:[#allocation0]]
  $region68: #{tpu_custom_call.1} parent=0
    _
  %s9 = ssub.s32 1, %s7
  %s10 = scalar_select 0, %s9, %s7
  $region1: #{tpu_custom_call.1} parent=0
    #allocation2 [shape = 'u8[262144]{0}', space=vmem, size = 0x40000, scoped, tag = 'input window, operand 0']
    #allocation3 [shape = 's32[2]{0}', space=sflag, size = 0x8, scoped, tag = 'scoped memory for tpu_custom_call.1']
    #allocation4 [shape = 's32[2]{0}', space=sflag, size = 0x8, scoped, tag = 'scoped memory for tpu_custom_call.1']
    #allocation5 [shape = 'u8[524288]{0}', space=vmem, size = 0x80000, scoped, tag = 'output window, operand 0']
    %11 = vsyncpa [#allocation3], 0
    %s12 = scalar_lea.sflag [#allocation3], 1
    %13 = vsyncpa %s12, 0
    %14 = vsyncpa [#allocation4], 0
    %s15 = scalar_lea.sflag [#allocation4], 1
    %16 = vsyncpa %s15, 0
    loop: start=0, step=1, limit=4
    $region2: #{tpu_custom_call.1} parent=1 // loop_pre_header
      _
    $region3: #{tpu_custom_call.1} parent=1 // loop_header
      %s18 = sphi 0, %s22
      %p19 = scmp.ge.s32.totalorder %s18, 4
      %s28 = sphi 0, %s30
      %s31 = sphi 0, %s28
      %s32 = sphi 0, %s31
      %s48 = sphi 0, %s32
      %s52 = sphi 0, %s52
      %s54 = sphi 0, %s52
      %s55 = sphi 0, %s54
      %s69 = sphi 0, %s55
      %s73 = sphi 0, %s73
      %s75 = sphi 0, %s73
      %s76 = sphi 0, %s75
      %s90 = sphi 0, %s76
      %s94 = sphi 0, %s94
      %s96 = sphi 0, %s94
      %s97 = sphi 0, %s96
      %s111 = sphi 0, %s97
      %s115 = sphi 0, %s115
      %s117 = sphi 0, %s115
      %s118 = sphi 0, %s117
      %s132 = sphi 0, %s118
      %s136 = sphi 0, %s136
      %s138 = sphi 0, %s136
      %s139 = sphi 0, %s138
      %s153 = sphi 0, %s139
      %s159 = sphi 0, %s161
      %s162 = sphi 0, %s159
      %s163 = sphi 0, %s162
      %s179 = sphi 0, %s163
    $region4: #{tpu_custom_call.1} parent=1 // loop_header_branch
      %21 = sbr.rel (%p19) target = $region8
    $region5: #{tpu_custom_call.1} parent=1 // loop_body
      %s23 = ssub.s32 %s18, 1
      %s24 = ssub.s32 %s18, 2
      %s25 = sadd.s32 %s18, 1
      %s26 = ssub.s32 %s18, %s25
      %p27 = scmp.eq.s32.totalorder %s26, 0
      %s29 = sadd.s32 %s28, 1
      %s30 = scalar_select %p27, %s28, %s29
      %p33 = pneg %p27
      %p34 = scmp.eq.s32.totalorder %s18, 1
      %p35 = por %p33, %p34
      %p36 = scmp.ne.s32.totalorder %s28, %s31
      %p37 = scmp.eq.s32.totalorder %s18, 0
      %p38 = por %p36, %p37
      %p39 = scmp.ne.s32.totalorder %s28, %s31
      %p40 = scmp.eq.s32.totalorder %s23, 1
      %p41 = por %p39, %p40
      %p42 = scmp.ne.s32.totalorder %s31, %s32
      %p43 = scmp.eq.s32.totalorder %s23, 0
      %p44 = por %p42, %p43
      %p45 = scmp.ne.s32.totalorder %s31, %s32
      %p46 = scmp.eq.s32.totalorder %s24, 1
      %p47 = por %p45, %p46
      %p49 = scmp.ne.s32.totalorder %s32, %s48
      %p50 = scmp.eq.s32.totalorder %s24, 0
      %p51 = por %p49, %p50
      %s53 = sadd.s32 %s52, 1
      %p56 = scmp.eq.s32.totalorder %s18, 1
      %p57 = scmp.ne.s32.totalorder %s52, %s54
      %p58 = scmp.eq.s32.totalorder %s18, 0
      %p59 = por %p57, %p58
      %p60 = scmp.ne.s32.totalorder %s52, %s54
      %p61 = scmp.eq.s32.totalorder %s23, 1
      %p62 = por %p60, %p61
      %p63 = scmp.ne.s32.totalorder %s54, %s55
      %p64 = scmp.eq.s32.totalorder %s23, 0
      %p65 = por %p63, %p64
      %p66 = scmp.ne.s32.totalorder %s54, %s55
      %p67 = scmp.eq.s32.totalorder %s24, 1
      %p68 = por %p66, %p67
      %p70 = scmp.ne.s32.totalorder %s55, %s69
      %p71 = scmp.eq.s32.totalorder %s24, 0
      %p72 = por %p70, %p71
      %s74 = sadd.s32 %s73, 1
      %p77 = scmp.eq.s32.totalorder %s18, 1
      %p78 = scmp.ne.s32.totalorder %s73, %s75
      %p79 = scmp.eq.s32.totalorder %s18, 0
      %p80 = por %p78, %p79
      %p81 = scmp.ne.s32.totalorder %s73, %s75
      %p82 = scmp.eq.s32.totalorder %s23, 1
      %p83 = por %p81, %p82
      %p84 = scmp.ne.s32.totalorder %s75, %s76
      %p85 = scmp.eq.s32.totalorder %s23, 0
      %p86 = por %p84, %p85
      %p87 = scmp.ne.s32.totalorder %s75, %s76
      %p88 = scmp.eq.s32.totalorder %s24, 1
      %p89 = por %p87, %p88
      %p91 = scmp.ne.s32.totalorder %s76, %s90
      %p92 = scmp.eq.s32.totalorder %s24, 0
      %p93 = por %p91, %p92
      %s95 = sadd.s32 %s94, 1
      %p98 = scmp.eq.s32.totalorder %s18, 1
      %p99 = scmp.ne.s32.totalorder %s94, %s96
      %p100 = scmp.eq.s32.totalorder %s18, 0
      %p101 = por %p99, %p100
      %p102 = scmp.ne.s32.totalorder %s94, %s96
      %p103 = scmp.eq.s32.totalorder %s23, 1
      %p104 = por %p102, %p103
      %p105 = scmp.ne.s32.totalorder %s96, %s97
      %p106 = scmp.eq.s32.totalorder %s23, 0
      %p107 = por %p105, %p106
      %p108 = scmp.ne.s32.totalorder %s96, %s97
      %p109 = scmp.eq.s32.totalorder %s24, 1
      %p110 = por %p108, %p109
      %p112 = scmp.ne.s32.totalorder %s97, %s111
      %p113 = scmp.eq.s32.totalorder %s24, 0
      %p114 = por %p112, %p113
      %s116 = sadd.s32 %s115, 1
      %p119 = scmp.eq.s32.totalorder %s18, 1
      %p120 = scmp.ne.s32.totalorder %s115, %s117
      %p121 = scmp.eq.s32.totalorder %s18, 0
      %p122 = por %p120, %p121
      %p123 = scmp.ne.s32.totalorder %s115, %s117
      %p124 = scmp.eq.s32.totalorder %s23, 1
      %p125 = por %p123, %p124
      %p126 = scmp.ne.s32.totalorder %s117, %s118
      %p127 = scmp.eq.s32.totalorder %s23, 0
      %p128 = por %p126, %p127
      %p129 = scmp.ne.s32.totalorder %s117, %s118
      %p130 = scmp.eq.s32.totalorder %s24, 1
      %p131 = por %p129, %p130
      %p133 = scmp.ne.s32.totalorder %s118, %s132
      %p134 = scmp.eq.s32.totalorder %s24, 0
      %p135 = por %p133, %p134
      %s137 = sadd.s32 %s136, 1
      %p140 = scmp.eq.s32.totalorder %s18, 1
      %p141 = scmp.ne.s32.totalorder %s136, %s138
      %p142 = scmp.eq.s32.totalorder %s18, 0
      %p143 = por %p141, %p142
      %p144 = scmp.ne.s32.totalorder %s136, %s138
      %p145 = scmp.eq.s32.totalorder %s23, 1
      %p146 = por %p144, %p145
      %p147 = scmp.ne.s32.totalorder %s138, %s139
      %p148 = scmp.eq.s32.totalorder %s23, 0
      %p149 = por %p147, %p148
      %p150 = scmp.ne.s32.totalorder %s138, %s139
      %p151 = scmp.eq.s32.totalorder %s24, 1
      %p152 = por %p150, %p151
      %p154 = scmp.ne.s32.totalorder %s139, %s153
      %p155 = scmp.eq.s32.totalorder %s24, 0
      %p156 = por %p154, %p155
      %s157 = ssub.s32 %s18, %s25
      %p158 = scmp.eq.s32.totalorder %s157, 0
      %s160 = sadd.s32 %s159, 1
      %s161 = scalar_select %p158, %s159, %s160
      %p164 = pneg %p158
      %p165 = scmp.eq.s32.totalorder %s18, 1
      %p166 = por %p164, %p165
      %p167 = scmp.ne.s32.totalorder %s159, %s162
      %p168 = scmp.eq.s32.totalorder %s18, 0
      %p169 = por %p167, %p168
      %p170 = scmp.ne.s32.totalorder %s159, %s162
      %p171 = scmp.eq.s32.totalorder %s23, 1
      %p172 = por %p170, %p171
      %p173 = scmp.ne.s32.totalorder %s162, %s163
      %p174 = scmp.eq.s32.totalorder %s23, 0
      %p175 = por %p173, %p174
      %p176 = scmp.ne.s32.totalorder %s162, %s163
      %p177 = scmp.eq.s32.totalorder %s24, 1
      %p178 = por %p176, %p177
      %p180 = scmp.ne.s32.totalorder %s163, %s179
      %p181 = scmp.eq.s32.totalorder %s24, 0
      %p182 = por %p180, %p181
      %p183 = scmp.le.s32.totalorder 1, %s18
      %p184 = scmp.lt.s32.totalorder %s18, 3
      %p185 = pnand %p183, %p184
      %p186 = pneg %p185
      // Predicated region
      $region9: #{tpu_custom_call.1} parent=5 // pred_check
        _
      $region10: #{tpu_custom_call.1} parent=5 // pred_check_branch
        %188 = sbr.rel (%p185) target = $region12
      $region11: #{tpu_custom_call.1} parent=5 // pred_region
        %s189 = ssub.s32 %s18, 1
        // Predicated region
        $region13: #{tpu_custom_call.1} parent=11 // pred_check
          %p190 = pneg %p65
        $region14: #{tpu_custom_call.1} parent=11 // pred_check_branch
          %192 = sbr.rel (%p190) target = $region16
        $region15: #{tpu_custom_call.1} parent=11 // pred_region
          _
        $region16: #{tpu_custom_call.1} parent=11 // pred_fallthru
          _
        // Predicated region
        $region17: #{tpu_custom_call.1} parent=11 // pred_check
          %p193 = pneg %p86
        $region18: #{tpu_custom_call.1} parent=11 // pred_check_branch
          %195 = sbr.rel (%p193) target = $region20
        $region19: #{tpu_custom_call.1} parent=11 // pred_region
          _
        $region20: #{tpu_custom_call.1} parent=11 // pred_fallthru
          _
        // Predicated region
        $region21: #{tpu_custom_call.1} parent=11 // pred_check
          %p196 = pneg %p107
        $region22: #{tpu_custom_call.1} parent=11 // pred_check_branch
          %198 = sbr.rel (%p196) target = $region24
        $region23: #{tpu_custom_call.1} parent=11 // pred_region
          _
        $region24: #{tpu_custom_call.1} parent=11 // pred_fallthru
          _
        // Predicated region
        $region25: #{tpu_custom_call.1} parent=11 // pred_check
          %p199 = pneg %p128
        $region26: #{tpu_custom_call.1} parent=11 // pred_check_branch
          %201 = sbr.rel (%p199) target = $region28
        $region27: #{tpu_custom_call.1} parent=11 // pred_region
          _
        $region28: #{tpu_custom_call.1} parent=11 // pred_fallthru
          _
        // Predicated region
        $region29: #{tpu_custom_call.1} parent=11 // pred_check
          %p202 = pneg %p149
        $region30: #{tpu_custom_call.1} parent=11 // pred_check_branch
          %204 = sbr.rel (%p202) target = $region32
        $region31: #{tpu_custom_call.1} parent=11 // pred_region
          _
        $region32: #{tpu_custom_call.1} parent=11 // pred_fallthru
          _
      $region12: #{tpu_custom_call.1} parent=5 // pred_fallthru
        _
      %p205 = scmp.lt.s32.totalorder %s18, 2
      // Predicated region
      $region33: #{tpu_custom_call.1} parent=5 // pred_check
        %p206 = pneg %p205
      $region34: #{tpu_custom_call.1} parent=5 // pred_check_branch
        %208 = sbr.rel (%p206) target = $region36
      $region35: #{tpu_custom_call.1} parent=5 // pred_region
        // Predicated region
        $region37: #{tpu_custom_call.1} parent=35 // pred_check
          %p209 = pneg %p38
        $region38: #{tpu_custom_call.1} parent=35 // pred_check_branch
          %211 = sbr.rel (%p209) target = $region40
        $region39: #{tpu_custom_call.1} parent=35 // pred_region
          %s212 = sand.u32 %s28, 1
          %s213 = scalar_lea.sflag [#allocation3], %s212
          %s214 = sand.u32 %s28, 1
          %s215 = smul.addr %s214, 256
          %s216 = scalar_lea.vmem [#allocation2], %s215
          %s217 = smul.u32 2, %s18
          %s219 = ssub.s32 4096, 4096
          %220 = vsyncadd %s213, %s219
          %s221 = smul.addr %s217, 32
          %s222 = smul.addr %s221, 64
          %s223 = scalar_lea.hbm %s0, %s222
          %s224 = sshll.u32 %s216, 4
          %s225 = int_to_ptr.vmem [resolvable:$true] %s224
          %230 = dma.hbm_to_vmem [thread:$0]  %s223, 4096, %s225, %s213, 512, 512, 32
        $region40: #{tpu_custom_call.1} parent=35 // pred_fallthru
          _
      $region36: #{tpu_custom_call.1} parent=5 // pred_fallthru
        _
      %p231 = scmp.le.s32.totalorder 1, %s18
      %p232 = scmp.lt.s32.totalorder %s18, 3
      %p233 = pnand %p231, %p232
      %p234 = pneg %p233
      // Predicated region
      $region41: #{tpu_custom_call.1} parent=5 // pred_check
        _
      $region42: #{tpu_custom_call.1} parent=5 // pred_check_branch
        %236 = sbr.rel (%p233) target = $region44
      $region43: #{tpu_custom_call.1} parent=5 // pred_region
        %s237 = ssub.s32 %s18, 1
        %s238 = sand.u32 %s31, 1
        %s239 = scalar_lea.sflag [#allocation3], %s238
        %s240 = sand.u32 %s31, 1
        %s241 = smul.addr %s240, 256
        %s242 = scalar_lea.vmem [#allocation2], %s241
        // Predicated region
        $region45: #{tpu_custom_call.1} parent=43 // pred_check
          %p243 = pneg %p44
        $region46: #{tpu_custom_call.1} parent=43 // pred_check_branch
          %245 = sbr.rel (%p243) target = $region48
        $region47: #{tpu_custom_call.1} parent=43 // pred_region
          %246 = dma.done %s239, 4096
        $region48: #{tpu_custom_call.1} parent=43 // pred_fallthru
          _
        %s247 = sand.u32 %s31, 1
        %s248 = scalar_lea.sflag [#allocation3], %s247
        %s249 = sand.u32 %s31, 1
        %s250 = smul.addr %s249, 256
        %s251 = scalar_lea.vmem [#allocation2], %s250
        %p252 = pneg %p44
        %p253 = pneg %p41
        %p254 = pneg %p65
        %p255 = pneg %p62
        %p256 = pneg %p86
        %p257 = pneg %p83
        %p258 = pneg %p107
        %p259 = pneg %p104
        %p260 = pneg %p128
        %p261 = pneg %p125
        %p262 = pneg %p149
        %p263 = pneg %p146
        %p264 = pneg %p175
        %p265 = pneg %p172
        %s266 = sand.u32 %s162, 1
        %s267 = scalar_lea.sflag [#allocation4], %s266
        %s268 = sand.u32 %s162, 1
        %s269 = smul.addr %s268, 512
        %s270 = scalar_lea.vmem [#allocation5], %s269
        %s271 = smul.u32 2, %s23
        %s272 = smul.u32 2, %s23
        %v274 = vld [vmem:[%s1] sm:$0xf]
        %v275 = vld [vmem:[%s1 + $0x4] sm:$0xf]
        %v276 = vld [vmem:[%s1 + $0x8] sm:$0xf]
        %v277 = vld [vmem:[%s1 + $0xc] sm:$0xf]
        %v278 = vld [vmem:[%s1 + $0x10] sm:$0xf]
        %v279 = vld [vmem:[%s1 + $0x14] sm:$0xf]
        %v280 = vld [vmem:[%s1 + $0x18] sm:$0xf]
        %v281 = vld [vmem:[%s1 + $0x1c] sm:$0xf]
        %v282 = vld [vmem:[%s1 + $0x20] sm:$0xf]
        %v283 = vld [vmem:[%s3] sm:$0xf]
        %v284 = vld [vmem:[%s3 + $0x4] sm:$0xf]
        %v285 = vld [vmem:[%s3 + $0x8] sm:$0xf]
        %v286 = vld [vmem:[%s3 + $0xc] sm:$0xf]
        %v287 = vld [vmem:[%s5] sm:$0xff]
        %v288 = vld [vmem:[%s5 + $0x8] sm:$0xff]
        %v289 = vld [vmem:[%s5 + $0x10] sm:$0xff]
        %v290 = vld [vmem:[%s5 + $0x18] sm:$0xff]
        %v291 = vld [vmem:[%s2] sm:$0xff]
        %v292 = vld [vmem:[%s2 + $0x8] sm:$0xff]
        %v293 = vld [vmem:[%s2 + $0x10] sm:$0xff]
        %v294 = vld [vmem:[%s2 + $0x18] sm:$0xff]
        %v295 = vld [vmem:[%s2 + $0x20] sm:$0xff]
        %v296 = vld [vmem:[%s2 + $0x28] sm:$0xff]
        %v297 = vld [vmem:[%s2 + $0x30] sm:$0xff]
        %v298 = vld [vmem:[%s2 + $0x38] sm:$0xff]
        %v299 = vld [vmem:[%s2 + $0x40] sm:$0xff]
        %301 = vset.pattern.permute.xlu0 0
        %302 = vperm.xlu0 %301, %v291
        %v303 = vpop.permute.xlu0 %302
        %306 = vset.pattern.permute.xlu0 0
        %307 = vperm.xlu0 %306, %v292
        %v308 = vpop.permute.xlu0 %307
        %311 = vset.pattern.permute.xlu0 0
        %312 = vperm.xlu0 %311, %v293
        %v313 = vpop.permute.xlu0 %312
        %316 = vset.pattern.permute.xlu0 0
        %317 = vperm.xlu0 %316, %v294
        %v318 = vpop.permute.xlu0 %317
        %321 = vset.pattern.permute.xlu0 0
        %322 = vperm.xlu0 %321, %v295
        %v323 = vpop.permute.xlu0 %322
        %326 = vset.pattern.permute.xlu0 0
        %327 = vperm.xlu0 %326, %v296
        %v328 = vpop.permute.xlu0 %327
        %331 = vset.pattern.permute.xlu0 0
        %332 = vperm.xlu0 %331, %v297
        %v333 = vpop.permute.xlu0 %332
        %336 = vset.pattern.permute.xlu0 0
        %337 = vperm.xlu0 %336, %v298
        %v338 = vpop.permute.xlu0 %337
        %341 = vset.pattern.permute.xlu0 0
        %342 = vperm.xlu0 %341, %v299
        %v343 = vpop.permute.xlu0 %342
        %v345 = vld [vmem:[%s4] sm:$0xff]
        %v346 = vld [vmem:[%s4 + $0x8] sm:$0xff]
        %v347 = vld [vmem:[%s4 + $0x10] sm:$0xff]
        %v348 = vld [vmem:[%s4 + $0x18] sm:$0xff]
        %350 = vset.pattern.permute.xlu0 0
        %351 = vperm.xlu0 %350, %v345
        %v352 = vpop.permute.xlu0 %351
        %355 = vset.pattern.permute.xlu0 0
        %356 = vperm.xlu0 %355, %v346
        %v357 = vpop.permute.xlu0 %356
        %360 = vset.pattern.permute.xlu0 0
        %361 = vperm.xlu0 %360, %v347
        %v362 = vpop.permute.xlu0 %361
        %365 = vset.pattern.permute.xlu0 0
        %366 = vperm.xlu0 %365, %v348
        %v367 = vpop.permute.xlu0 %366
        %s369 = smul.u32 %s23, 2
        %s370 = ssub.s32 4, %s369
        %p371 = scmp.lt.s32.totalorder %s370, 2
        %s372 = scalar_select %p371, %s370, 2
        // While loop
        $region49: #{tpu_custom_call.1} parent=43 // loop_pre_header
          _
        $region50: #{tpu_custom_call.1} parent=43 // loop_header
          %s374 = sphi 0, %s376
          %p375 = scmp.ge.s32.totalorder %s374, %s372
        $region51: #{tpu_custom_call.1} parent=43 // loop_header_branch
          %378 = sbr.rel (%p375) target = $region55
        $region52: #{tpu_custom_call.1} parent=43 // loop_body
          %s379 = smul.u32 %s374, 32
          %s380 = smul.addr %s379, 4
          %s381 = scalar_lea.vmem %s242, %s380 [#allocation2]
          %v382 = vld [vmem:[%s381] sm:$0xff]
          %v383 = vld [vmem:[%s381 + $0x8] sm:$0xff]
          %v384 = vld [vmem:[%s381 + $0x10] sm:$0xff]
          %v385 = vld [vmem:[%s381 + $0x18] sm:$0xff]
          %v386 = vld [vmem:[%s381 + $0x20] sm:$0xff]
          %v387 = vld [vmem:[%s381 + $0x28] sm:$0xff]
          %v388 = vld [vmem:[%s381 + $0x30] sm:$0xff]
          %v389 = vld [vmem:[%s381 + $0x38] sm:$0xff]
          %v390 = vld [vmem:[%s381 + $0x40] sm:$0xff]
          %v391 = vld [vmem:[%s381 + $0x48] sm:$0xff]
          %v392 = vld [vmem:[%s381 + $0x50] sm:$0xff]
          %v393 = vld [vmem:[%s381 + $0x58] sm:$0xff]
          %v394 = vld [vmem:[%s381 + $0x60] sm:$0xff]
          %v395 = vld [vmem:[%s381 + $0x68] sm:$0xff]
          %v396 = vld [vmem:[%s381 + $0x70] sm:$0xff]
          %v397 = vld [vmem:[%s381 + $0x78] sm:$0xff]
          %v407 = vunpack.c.l.b16 %v274
          %v408 = vunpack.c.l.b16 %v275
          %v409 = vunpack.c.l.b16 %v276
          %v410 = vunpack.c.l.b16 %v277
          %v411 = vunpack.c.l.b16 %v278
          %v412 = vunpack.c.l.b16 %v279
          %v413 = vunpack.c.l.b16 %v280
          %v414 = vunpack.c.l.b16 %v281
          %v415 = vunpack.c.l.b16 %v282
          %v416 = vpack.c.b16 %v408, %v407
          %v417 = vpack.c.b16 %v410, %v409
          %v418 = vpack.c.b16 %v412, %v411
          %v419 = vpack.c.b16 %v414, %v413
          %v420 = vpack.c.b16 %v415, %v415
          %v437 = vunpack.c.l.b16 %v382
          %v438 = vunpack.c.h.b16 %v382
          %v439 = vunpack.c.l.b16 %v383
          %v440 = vunpack.c.h.b16 %v383
          %v441 = vunpack.c.l.b16 %v384
          %v442 = vunpack.c.h.b16 %v384
          %v443 = vunpack.c.l.b16 %v385
          %v444 = vunpack.c.h.b16 %v385
          %v445 = vunpack.c.l.b16 %v386
          %v446 = vunpack.c.h.b16 %v386
          %v447 = vunpack.c.l.b16 %v387
          %v448 = vunpack.c.h.b16 %v387
          %v449 = vunpack.c.l.b16 %v388
          %v450 = vunpack.c.h.b16 %v388
          %v451 = vunpack.c.l.b16 %v389
          %v452 = vunpack.c.h.b16 %v389
          %v453 = vunpack.c.l.b16 %v390
          %v454 = vunpack.c.h.b16 %v390
          %v455 = vunpack.c.l.b16 %v391
          %v456 = vunpack.c.h.b16 %v391
          %v457 = vunpack.c.l.b16 %v392
          %v458 = vunpack.c.h.b16 %v392
          %v459 = vunpack.c.l.b16 %v393
          %v460 = vunpack.c.h.b16 %v393
          %v461 = vunpack.c.l.b16 %v394
          %v462 = vunpack.c.h.b16 %v394
          %v463 = vunpack.c.l.b16 %v395
          %v464 = vunpack.c.h.b16 %v395
          %v465 = vunpack.c.l.b16 %v396
          %v466 = vunpack.c.h.b16 %v396
          %v467 = vunpack.c.l.b16 %v397
          %v468 = vunpack.c.h.b16 %v397
          %v469 = vpack.c.b16 %v445, %v437
          %v470 = vpack.c.b16 %v446, %v438
          %v471 = vpack.c.b16 %v447, %v439
          %v472 = vpack.c.b16 %v448, %v440
          %v473 = vpack.c.b16 %v449, %v441
          %v474 = vpack.c.b16 %v450, %v442
          %v475 = vpack.c.b16 %v451, %v443
          %v476 = vpack.c.b16 %v452, %v444
          %v477 = vpack.c.b16 %v461, %v453
          %v478 = vpack.c.b16 %v462, %v454
          %v479 = vpack.c.b16 %v463, %v455
          %v480 = vpack.c.b16 %v464, %v456
          %v481 = vpack.c.b16 %v465, %v457
          %v482 = vpack.c.b16 %v466, %v458
          %v483 = vpack.c.b16 %v467, %v459
          %v484 = vpack.c.b16 %v468, %v460
          %vm501 = vcmask 261120
          %v503 = vsel %vm501, %v416, 0
          %v506 = vsel %vm501, %v417, 0
          %v509 = vsel %vm501, %v418, 0
          %v512 = vsel %vm501, %v419, 0
          %v515 = vsel %vm501, %v420, 0
          %517 = vmatprep.subr.bf16.mxu0 %v470
          %518 = vmatpush1.bf16.msra.mxu0 %v469
          %519 = vmatprep.subr.bf16.mxu0 %v478
          %520 = vmatpush1.bf16.msra.mxu0 %v477
          %521 = vmatprep.subr.bf16.mxu0 0
          %522 = vmatpush1.bf16.msra.mxu0 0
          %523 = vmatprep.subr.bf16.mxu0 0
          %524 = vmatpush1.bf16.msra.mxu0 0
          %525 = vmatprep.subr.bf16.mxu0 0
          %526 = vmatpush1.bf16.msra.mxu0 0
          %527 = vmatprep.subr.bf16.mxu0 0
          %528 = vmatpush1.bf16.msra.mxu0 0
          %529 = vmatprep.subr.bf16.mxu0 0
          %530 = vmatpush1.bf16.msra.mxu0 0
          %531 = vmatprep.subr.bf16.mxu0 0
          %532 = vmatpush1.bf16.msra.mxu0 0
          %533 = vmatprep.subr.bf16.mxu0 0
          %534 = vmatpush1.bf16.msra.mxu0 0
          %535 = vmatprep.subr.bf16.mxu0 0
          %536 = vmatpush1.bf16.msra.mxu0 0
          %537 = vmatprep.subr.bf16.mxu0 0
          %538 = vmatpush1.bf16.msra.mxu0 0
          %539 = vmatprep.subr.bf16.mxu0 0
          %540 = vmatpush1.bf16.msra.mxu0 0
          %541 = vmatprep.subr.bf16.mxu0 0
          %542 = vmatpush1.bf16.msra.mxu0 0
          %543 = vmatprep.subr.bf16.mxu0 0
          %544 = vmatpush1.bf16.msra.mxu0 0
          %545 = vmatprep.subr.bf16.mxu0 0
          %546 = vmatpush1.bf16.msra.mxu0 0
          %547 = vmatprep.subr.bf16.mxu0 0
          %548 = vmatpush1.bf16.msra.mxu0 0
          %549 = vmatprep.mubr.bf16.mxu0 0
          %550 = vmatmul.mubr.bf16.gmra.mrb[0].mxu0 %v503
          %v551 = vpop.f32.mrb[0].mxu0
          %v552 = vadd.f32 %v303, %v551
          %v553 = vpop.f32.mrb[0].mxu0
          %v554 = vadd.f32 %v303, %v553
          %v555 = vpop.f32.mrb[0].mxu0
          %v556 = vadd.f32 %v308, %v555
          %v557 = vpop.f32.mrb[0].mxu0
          %v558 = vadd.f32 %v308, %v557
          %559 = vmatprep.mubr.bf16.mxu0 0
          %560 = vmatmul.mubr.bf16.gmra.mrb[0].mxu0 %v506
          %v561 = vpop.f32.mrb[0].mxu0
          %v562 = vadd.f32 %v313, %v561
          %v563 = vpop.f32.mrb[0].mxu0
          %v564 = vadd.f32 %v313, %v563
          %v565 = vpop.f32.mrb[0].mxu0
          %v566 = vadd.f32 %v318, %v565
          %v567 = vpop.f32.mrb[0].mxu0
          %v568 = vadd.f32 %v318, %v567
          %569 = vmatprep.mubr.bf16.mxu0 0
          %570 = vmatmul.mubr.bf16.gmra.mrb[0].mxu0 %v509
          %v571 = vpop.f32.mrb[0].mxu0
          %v572 = vadd.f32 %v323, %v571
          %v573 = vpop.f32.mrb[0].mxu0
          %v574 = vadd.f32 %v323, %v573
          %v575 = vpop.f32.mrb[0].mxu0
          %v576 = vadd.f32 %v328, %v575
          %v577 = vpop.f32.mrb[0].mxu0
          %v578 = vadd.f32 %v328, %v577
          %579 = vmatprep.mubr.bf16.mxu0 0
          %580 = vmatmul.mubr.bf16.gmra.mrb[0].mxu0 %v512
          %v581 = vpop.f32.mrb[0].mxu0
          %v582 = vadd.f32 %v333, %v581
          %v583 = vpop.f32.mrb[0].mxu0
          %v584 = vadd.f32 %v333, %v583
          %v585 = vpop.f32.mrb[0].mxu0
          %v586 = vadd.f32 %v338, %v585
          %v587 = vpop.f32.mrb[0].mxu0
          %v588 = vadd.f32 %v338, %v587
          %589 = vmatprep.mubr.bf16.mxu0 0
          %590 = vmatmul.mubr.bf16.gmra.mrb[0].mxu0 %v515
          %v591 = vpop.f32.mrb[0].mxu0
          %v592 = vadd.f32 %v343, %v591
          %v593 = vpop.f32.mrb[0].mxu0
          %v594 = vadd.f32 %v343, %v593
          %v595 = vpop.f32.mrb[0].mxu0
          %v596 = vpop.f32.mrb[0].mxu0
          %597 = vdwg.mxu0
          %598 = vmatprep.subr.bf16.mxu0 %v472
          %599 = vmatpush1.bf16.msra.mxu0 %v471
          %600 = vmatprep.subr.bf16.mxu0 %v480
          %601 = vmatpush1.bf16.msra.mxu0 %v479
          %602 = vmatprep.subr.bf16.mxu0 0
          %603 = vmatpush1.bf16.msra.mxu0 0
          %604 = vmatprep.subr.bf16.mxu0 0
          %605 = vmatpush1.bf16.msra.mxu0 0
          %606 = vmatprep.subr.bf16.mxu0 0
          %607 = vmatpush1.bf16.msra.mxu0 0
          %608 = vmatprep.subr.bf16.mxu0 0
          %609 = vmatpush1.bf16.msra.mxu0 0
          %610 = vmatprep.subr.bf16.mxu0 0
          %611 = vmatpush1.bf16.msra.mxu0 0
          %612 = vmatprep.subr.bf16.mxu0 0
          %613 = vmatpush1.bf16.msra.mxu0 0
          %614 = vmatprep.subr.bf16.mxu0 0
          %615 = vmatpush1.bf16.msra.mxu0 0
          %616 = vmatprep.subr.bf16.mxu0 0
          %617 = vmatpush1.bf16.msra.mxu0 0
          %618 = vmatprep.subr.bf16.mxu0 0
          %619 = vmatpush1.bf16.msra.mxu0 0
          %620 = vmatprep.subr.bf16.mxu0 0
          %621 = vmatpush1.bf16.msra.mxu0 0
          %622 = vmatprep.subr.bf16.mxu0 0
          %623 = vmatpush1.bf16.msra.mxu0 0
          %624 = vmatprep.subr.bf16.mxu0 0
          %625 = vmatpush1.bf16.msra.mxu0 0
          %626 = vmatprep.subr.bf16.mxu0 0
          %627 = vmatpush1.bf16.msra.mxu0 0
          %628 = vmatprep.subr.bf16.mxu0 0
          %629 = vmatpush1.bf16.msra.mxu0 0
          %630 = vmatprep.mubr.bf16.mxu0 0
          %631 = vmatmul.mubr.bf16.gmra.mrb[0].mxu0 %v503
          %v632 = vpop.f32.mrb[0].mxu0
          %v633 = vadd.f32 %v303, %v632
          %v634 = vpop.f32.mrb[0].mxu0
          %v635 = vadd.f32 %v303, %v634
          %v636 = vpop.f32.mrb[0].mxu0
          %v637 = vadd.f32 %v308, %v636
          %v638 = vpop.f32.mrb[0].mxu0
          %v639 = vadd.f32 %v308, %v638
          %640 = vmatprep.mubr.bf16.mxu0 0
          %641 = vmatmul.mubr.bf16.gmra.mrb[0].mxu0 %v506
          %v642 = vpop.f32.mrb[0].mxu0
          %v643 = vadd.f32 %v313, %v642
          %v644 = vpop.f32.mrb[0].mxu0
          %v645 = vadd.f32 %v313, %v644
          %v646 = vpop.f32.mrb[0].mxu0
          %v647 = vadd.f32 %v318, %v646
          %v648 = vpop.f32.mrb[0].mxu0
          %v649 = vadd.f32 %v318, %v648
          %650 = vmatprep.mubr.bf16.mxu0 0
          %651 = vmatmul.mubr.bf16.gmra.mrb[0].mxu0 %v509
          %v652 = vpop.f32.mrb[0].mxu0
          %v653 = vadd.f32 %v323, %v652
          %v654 = vpop.f32.mrb[0].mxu0
          %v655 = vadd.f32 %v323, %v654
          %v656 = vpop.f32.mrb[0].mxu0
          %v657 = vadd.f32 %v328, %v656
          %v658 = vpop.f32.mrb[0].mxu0
          %v659 = vadd.f32 %v328, %v658
          %660 = vmatprep.mubr.bf16.mxu0 0
          %661 = vmatmul.mubr.bf16.gmra.mrb[0].mxu0 %v512
          %v662 = vpop.f32.mrb[0].mxu0
          %v663 = vadd.f32 %v333, %v662
          %v664 = vpop.f32.mrb[0].mxu0
          %v665 = vadd.f32 %v333, %v664
          %v666 = vpop.f32.mrb[0].mxu0
          %v667 = vadd.f32 %v338, %v666
          %v668 = vpop.f32.mrb[0].mxu0
          %v669 = vadd.f32 %v338, %v668
          %670 = vmatprep.mubr.bf16.mxu0 0
          %671 = vmatmul.mubr.bf16.gmra.mrb[0].mxu0 %v515
          %v672 = vpop.f32.mrb[0].mxu0
          %v673 = vadd.f32 %v343, %v672
          %v674 = vpop.f32.mrb[0].mxu0
          %v675 = vadd.f32 %v343, %v674
          %v676 = vpop.f32.mrb[0].mxu0
          %v677 = vpop.f32.mrb[0].mxu0
          %678 = vdwg.mxu0
          %679 = vmatprep.subr.bf16.mxu0 %v474
          %680 = vmatpush1.bf16.msra.mxu0 %v473
          %681 = vmatprep.subr.bf16.mxu0 %v482
          %682 = vmatpush1.bf16.msra.mxu0 %v481
          %683 = vmatprep.subr.bf16.mxu0 0
          %684 = vmatpush1.bf16.msra.mxu0 0
          %685 = vmatprep.subr.bf16.mxu0 0
          %686 = vmatpush1.bf16.msra.mxu0 0
          %687 = vmatprep.subr.bf16.mxu0 0
          %688 = vmatpush1.bf16.msra.mxu0 0
          %689 = vmatprep.subr.bf16.mxu0 0
          %690 = vmatpush1.bf16.msra.mxu0 0
          %691 = vmatprep.subr.bf16.mxu0 0
          %692 = vmatpush1.bf16.msra.mxu0 0
          %693 = vmatprep.subr.bf16.mxu0 0
          %694 = vmatpush1.bf16.msra.mxu0 0
          %695 = vmatprep.subr.bf16.mxu0 0
          %696 = vmatpush1.bf16.msra.mxu0 0
          %697 = vmatprep.subr.bf16.mxu0 0
          %698 = vmatpush1.bf16.msra.mxu0 0
          %699 = vmatprep.subr.bf16.mxu0 0
          %700 = vmatpush1.bf16.msra.mxu0 0
          %701 = vmatprep.subr.bf16.mxu0 0
          %702 = vmatpush1.bf16.msra.mxu0 0
          %703 = vmatprep.subr.bf16.mxu0 0
          %704 = vmatpush1.bf16.msra.mxu0 0
          %705 = vmatprep.subr.bf16.mxu0 0
          %706 = vmatpush1.bf16.msra.mxu0 0
          %707 = vmatprep.subr.bf16.mxu0 0
          %708 = vmatpush1.bf16.msra.mxu0 0
          %709 = vmatprep.subr.bf16.mxu0 0
          %710 = vmatpush1.bf16.msra.mxu0 0
          %711 = vmatprep.mubr.bf16.mxu0 0
          %712 = vmatmul.mubr.bf16.gmra.mrb[0].mxu0 %v503
          %v713 = vpop.f32.mrb[0].mxu0
          %v714 = vadd.f32 %v303, %v713
          %v715 = vpop.f32.mrb[0].mxu0
          %v716 = vadd.f32 %v303, %v715
          %v717 = vpop.f32.mrb[0].mxu0
          %v718 = vadd.f32 %v308, %v717
          %v719 = vpop.f32.mrb[0].mxu0
          %v720 = vadd.f32 %v308, %v719
          %721 = vmatprep.mubr.bf16.mxu0 0
          %722 = vmatmul.mubr.bf16.gmra.mrb[0].mxu0 %v506
          %v723 = vpop.f32.mrb[0].mxu0
          %v724 = vadd.f32 %v313, %v723
          %v725 = vpop.f32.mrb[0].mxu0
          %v726 = vadd.f32 %v313, %v725
          %v727 = vpop.f32.mrb[0].mxu0
          %v728 = vadd.f32 %v318, %v727
          %v729 = vpop.f32.mrb[0].mxu0
          %v730 = vadd.f32 %v318, %v729
          %731 = vmatprep.mubr.bf16.mxu0 0
          %732 = vmatmul.mubr.bf16.gmra.mrb[0].mxu0 %v509
          %v733 = vpop.f32.mrb[0].mxu0
          %v734 = vadd.f32 %v323, %v733
          %v735 = vpop.f32.mrb[0].mxu0
          %v736 = vadd.f32 %v323, %v735
          %v737 = vpop.f32.mrb[0].mxu0
          %v738 = vadd.f32 %v328, %v737
          %v739 = vpop.f32.mrb[0].mxu0
          %v740 = vadd.f32 %v328, %v739
          %741 = vmatprep.mubr.bf16.mxu0 0
          %742 = vmatmul.mubr.bf16.gmra.mrb[0].mxu0 %v512
          %v743 = vpop.f32.mrb[0].mxu0
          %v744 = vadd.f32 %v333, %v743
          %v745 = vpop.f32.mrb[0].mxu0
          %v746 = vadd.f32 %v333, %v745
          %v747 = vpop.f32.mrb[0].mxu0
          %v748 = vadd.f32 %v338, %v747
          %v749 = vpop.f32.mrb[0].mxu0
          %v750 = vadd.f32 %v338, %v749
          %751 = vmatprep.mubr.bf16.mxu0 0
          %752 = vmatmul.mubr.bf16.gmra.mrb[0].mxu0 %v515
          %v753 = vpop.f32.mrb[0].mxu0
          %v754 = vadd.f32 %v343, %v753
          %v755 = vpop.f32.mrb[0].mxu0
          %v756 = vadd.f32 %v343, %v755
          %v757 = vpop.f32.mrb[0].mxu0
          %v758 = vpop.f32.mrb[0].mxu0
          %759 = vdwg.mxu0
          %760 = vmatprep.subr.bf16.mxu0 %v476
          %761 = vmatpush1.bf16.msra.mxu0 %v475
          %762 = vmatprep.subr.bf16.mxu0 %v484
          %763 = vmatpush1.bf16.msra.mxu0 %v483
          %764 = vmatprep.subr.bf16.mxu0 0
          %765 = vmatpush1.bf16.msra.mxu0 0
          %766 = vmatprep.subr.bf16.mxu0 0
          %767 = vmatpush1.bf16.msra.mxu0 0
          %768 = vmatprep.subr.bf16.mxu0 0
          %769 = vmatpush1.bf16.msra.mxu0 0
          %770 = vmatprep.subr.bf16.mxu0 0
          %771 = vmatpush1.bf16.msra.mxu0 0
          %772 = vmatprep.subr.bf16.mxu0 0
          %773 = vmatpush1.bf16.msra.mxu0 0
          %774 = vmatprep.subr.bf16.mxu0 0
          %775 = vmatpush1.bf16.msra.mxu0 0
          %776 = vmatprep.subr.bf16.mxu0 0
          %777 = vmatpush1.bf16.msra.mxu0 0
          %778 = vmatprep.subr.bf16.mxu0 0
          %779 = vmatpush1.bf16.msra.mxu0 0
          %780 = vmatprep.subr.bf16.mxu0 0
          %781 = vmatpush1.bf16.msra.mxu0 0
          %782 = vmatprep.subr.bf16.mxu0 0
          %783 = vmatpush1.bf16.msra.mxu0 0
          %784 = vmatprep.subr.bf16.mxu0 0
          %785 = vmatpush1.bf16.msra.mxu0 0
          %786 = vmatprep.subr.bf16.mxu0 0
          %787 = vmatpush1.bf16.msra.mxu0 0
          %788 = vmatprep.subr.bf16.mxu0 0
          %789 = vmatpush1.bf16.msra.mxu0 0
          %790 = vmatprep.subr.bf16.mxu0 0
          %791 = vmatpush1.bf16.msra.mxu0 0
          %792 = vmatprep.mubr.bf16.mxu0 0
          %793 = vmatmul.mubr.bf16.gmra.mrb[0].mxu0 %v503
          %v794 = vpop.f32.mrb[0].mxu0
          %v795 = vadd.f32 %v303, %v794
          %v796 = vpop.f32.mrb[0].mxu0
          %v797 = vadd.f32 %v303, %v796
          %v798 = vpop.f32.mrb[0].mxu0
          %v799 = vadd.f32 %v308, %v798
          %v800 = vpop.f32.mrb[0].mxu0
          %v801 = vadd.f32 %v308, %v800
          %802 = vmatprep.mubr.bf16.mxu0 0
          %803 = vmatmul.mubr.bf16.gmra.mrb[0].mxu0 %v506
          %v804 = vpop.f32.mrb[0].mxu0
          %v805 = vadd.f32 %v313, %v804
          %v806 = vpop.f32.mrb[0].mxu0
          %v807 = vadd.f32 %v313, %v806
          %v808 = vpop.f32.mrb[0].mxu0
          %v809 = vadd.f32 %v318, %v808
          %v810 = vpop.f32.mrb[0].mxu0
          %v811 = vadd.f32 %v318, %v810
          %812 = vmatprep.mubr.bf16.mxu0 0
          %813 = vmatmul.mubr.bf16.gmra.mrb[0].mxu0 %v509
          %v814 = vpop.f32.mrb[0].mxu0
          %v815 = vadd.f32 %v323, %v814
          %v816 = vpop.f32.mrb[0].mxu0
          %v817 = vadd.f32 %v323, %v816
          %v818 = vpop.f32.mrb[0].mxu0
          %v819 = vadd.f32 %v328, %v818
          %v820 = vpop.f32.mrb[0].mxu0
          %v821 = vadd.f32 %v328, %v820
          %822 = vmatprep.mubr.bf16.mxu0 0
          %823 = vmatmul.mubr.bf16.gmra.mrb[0].mxu0 %v512
          %v824 = vpop.f32.mrb[0].mxu0
          %v825 = vadd.f32 %v333, %v824
          %v826 = vpop.f32.mrb[0].mxu0
          %v827 = vadd.f32 %v333, %v826
          %v828 = vpop.f32.mrb[0].mxu0
          %v829 = vadd.f32 %v338, %v828
          %v830 = vpop.f32.mrb[0].mxu0
          %v831 = vadd.f32 %v338, %v830
          %832 = vmatprep.mubr.bf16.mxu0 0
          %833 = vmatmul.mubr.bf16.gmra.mrb[0].mxu0 %v515
          %v834 = vpop.f32.mrb[0].mxu0
          %v835 = vadd.f32 %v343, %v834
          %v836 = vpop.f32.mrb[0].mxu0
          %v837 = vadd.f32 %v343, %v836
          %v838 = vpop.f32.mrb[0].mxu0
          %v839 = vpop.f32.mrb[0].mxu0
          %840 = vdwg.mxu0
          %vm841 = vcmp.gt.f32.partialorder %v287, 0.0
          %vm842 = vcmp.gt.f32.partialorder %v288, 0.0
          %vm843 = vcmp.gt.f32.partialorder %v289, 0.0
          %vm844 = vcmp.gt.f32.partialorder %v290, 0.0
          %v845 = vlaneseq
          %v846 = vshrl.u32 %v845, 7
          %v847 = vsub.s32 0, %v846
          %v848 = vrot.slane %v592, %v847
          %v849 = vlaneseq
          %v850 = vshrl.u32 %v849, 7
          %v851 = vsub.s32 0, %v850
          %v852 = vrot.slane %v594, %v851
          %v853 = vlaneseq
          %v854 = vshrl.u32 %v853, 7
          %v855 = vsub.s32 0, %v854
          %v856 = vrot.slane %v673, %v855
          %v857 = vlaneseq
          %v858 = vshrl.u32 %v857, 7
          %v859 = vsub.s32 0, %v858
          %v860 = vrot.slane %v675, %v859
          %v861 = vlaneseq
          %v862 = vshrl.u32 %v861, 7
          %v863 = vsub.s32 0, %v862
          %v864 = vrot.slane %v754, %v863
          %v865 = vlaneseq
          %v866 = vshrl.u32 %v865, 7
          %v867 = vsub.s32 0, %v866
          %v868 = vrot.slane %v756, %v867
          %v869 = vlaneseq
          %v870 = vshrl.u32 %v869, 7
          %v871 = vsub.s32 0, %v870
          %v872 = vrot.slane %v835, %v871
          %v873 = vlaneseq
          %v874 = vshrl.u32 %v873, 7
          %v875 = vsub.s32 0, %v874
          %v876 = vrot.slane %v837, %v875
          %v885 = vcombine.low %v848, %v852
          %v886 = vcombine.low %v856, %v860
          %v887 = vcombine.low %v864, %v868
          %v888 = vcombine.low %v872, %v876
          %v893 = vsel %vm841, %v885, -1e+30
          %v894 = vsel %vm842, %v886, -1e+30
          %v895 = vsel %vm843, %v887, -1e+30
          %v896 = vsel %vm844, %v888, -1e+30
          %v901 = vcombine.high %v893, %v893
          %v902 = vcombine.high %v894, %v894
          %v903 = vcombine.high %v895, %v895
          %v904 = vcombine.high %v896, %v896
          %vm909 = vcmask 1043456
          %v910 = vsel %vm909, %v893, -inf
          %v911 = vsel %vm909, %v901, -inf
          %v912 = vsel %vm909, %v894, -inf
          %v913 = vsel %vm909, %v902, -inf
          %v914 = vsel %vm909, %v895, -inf
          %v915 = vmax.f32 %v910, %v914
          %v916 = vsel %vm909, %v903, -inf
          %v917 = vmax.f32 %v911, %v916
          %v918 = vsel %vm909, %v896, -inf
          %v919 = vmax.f32 %v912, %v918
          %v920 = vsel %vm909, %v904, -inf
          %v921 = vmax.f32 %v913, %v920
          %v922 = vmax.f32 %v915, %v917
          %v923 = vmax.f32 %v919, %v921
          %v924 = vmax.f32 %v922, %v923
          %925 = vmax.xlane.f32.xlu0 %v924
          %v926 = vpop.xlane.xlu0 %925
          %v929 = vunpack.c.l.s4 839922192
          %v930 = vunpack.c.0.s8 %v929
          %v931 = vlaneseq
          %v932 = vshrl.u32 %v931, 7
          %v933 = vsub.s32 %v930, %v932
          %v934 = vrot.slane %v926, %v933
          %v936 = vmul.f32 %v287, %v934
          %v937 = vmul.f32 %v288, %v934
          %v938 = vmul.f32 %v289, %v934
          %v939 = vmul.f32 %v290, %v934
          %v944 = vcombine.high %v936, %v936
          %v945 = vcombine.high %v937, %v937
          %v946 = vcombine.high %v938, %v938
          %v947 = vcombine.high %v939, %v939
          %v952 = vsel %vm909, %v936, 0.0
          %v953 = vrot.slane %v952, 4
          %v954 = vadd.f32 %v952, %v953
          %v955 = vrot.slane %v954, 2
          %v956 = vadd.f32 %v954, %v955
          %v957 = vrot.slane %v956, 1
          %v958 = vadd.f32 %v956, %v957
          %v959 = vsel %vm909, %v944, 0.0
          %v960 = vrot.slane %v959, 4
          %v961 = vadd.f32 %v959, %v960
          %v962 = vrot.slane %v961, 2
          %v963 = vadd.f32 %v961, %v962
          %v964 = vrot.slane %v963, 1
          %v965 = vadd.f32 %v963, %v964
          %v966 = vsel %vm909, %v937, 0.0
          %v967 = vrot.slane %v966, 4
          %v968 = vadd.f32 %v966, %v967
          %v969 = vrot.slane %v968, 2
          %v970 = vadd.f32 %v968, %v969
          %v971 = vrot.slane %v970, 1
          %v972 = vadd.f32 %v970, %v971
          %v973 = vsel %vm909, %v945, 0.0
          %v974 = vrot.slane %v973, 4
          %v975 = vadd.f32 %v973, %v974
          %v976 = vrot.slane %v975, 2
          %v977 = vadd.f32 %v975, %v976
          %v978 = vrot.slane %v977, 1
          %v979 = vadd.f32 %v977, %v978
          %v980 = vsel %vm909, %v938, 0.0
          %v981 = vrot.slane %v980, 4
          %v982 = vadd.f32 %v980, %v981
          %v983 = vrot.slane %v982, 2
          %v984 = vadd.f32 %v982, %v983
          %v985 = vrot.slane %v984, 1
          %v986 = vadd.f32 %v984, %v985
          %v987 = vsel %vm909, %v946, 0.0
          %v988 = vrot.slane %v987, 4
          %v989 = vadd.f32 %v987, %v988
          %v990 = vrot.slane %v989, 2
          %v991 = vadd.f32 %v989, %v990
          %v992 = vrot.slane %v991, 1
          %v993 = vadd.f32 %v991, %v992
          %v994 = vsel %vm909, %v939, 0.0
          %v995 = vrot.slane %v994, 4
          %v996 = vadd.f32 %v994, %v995
          %v997 = vrot.slane %v996, 2
          %v998 = vadd.f32 %v996, %v997
          %v999 = vrot.slane %v998, 1
          %v1000 = vadd.f32 %v998, %v999
          %v1001 = vsel %vm909, %v947, 0.0
          %v1002 = vrot.slane %v1001, 4
          %v1003 = vadd.f32 %v1001, %v1002
          %v1004 = vrot.slane %v1003, 2
          %v1005 = vadd.f32 %v1003, %v1004
          %v1006 = vrot.slane %v1005, 1
          %v1007 = vadd.f32 %v1005, %v1006
          %v1008 = vsub.f32 %v592, %v958
          %v1009 = vsub.f32 %v594, %v965
          %v1010 = vsub.f32 %v673, %v972
          %v1011 = vsub.f32 %v675, %v979
          %v1012 = vsub.f32 %v754, %v986
          %v1013 = vsub.f32 %v756, %v993
          %v1014 = vsub.f32 %v835, %v1000
          %v1015 = vsub.f32 %v837, %v1007
          %v1016 = vmul.f32 %v1008, 1.442695
          %v1017 = vpow.pop %v1016
          %v1018 = vmul.f32 %v1009, 1.442695
          %v1019 = vpow.pop %v1018
          %v1020 = vmul.f32 %v1010, 1.442695
          %v1021 = vpow.pop %v1020
          %v1022 = vmul.f32 %v1011, 1.442695
          %v1023 = vpow.pop %v1022
          %v1024 = vmul.f32 %v1012, 1.442695
          %v1025 = vpow.pop %v1024
          %v1026 = vmul.f32 %v1013, 1.442695
          %v1027 = vpow.pop %v1026
          %v1028 = vmul.f32 %v1014, 1.442695
          %v1029 = vpow.pop %v1028
          %v1030 = vmul.f32 %v1015, 1.442695
          %v1031 = vpow.pop %v1030
          %v1036 = vcombine.high %v287, %v287
          %v1037 = vcombine.high %v288, %v288
          %v1038 = vcombine.high %v289, %v289
          %v1039 = vcombine.high %v290, %v290
          %1044 = vmatprep.subr.mxu0 %v1036
          %1045 = vmatpush1.xpose.msra.mxu0 %v287
          %1046 = vmatprep.subr.mxu0 0.0
          %1047 = vmatpush1.xpose.msra.mxu0 0.0
          %1048 = vmatprep.subr.mxu0 0.0
          %1049 = vmatpush1.xpose.msra.mxu0 0.0
          %1050 = vmatprep.subr.mxu0 0.0
          %1051 = vmatpush1.xpose.msra.mxu0 0.0
          %1052 = vmatprep.subr.mxu0 0.0
          %1053 = vmatpush1.xpose.msra.mxu0 0.0
          %1054 = vmatprep.subr.mxu0 0.0
          %1055 = vmatpush1.xpose.msra.mxu0 0.0
          %1056 = vmatprep.subr.mxu0 0.0
          %1057 = vmatpush1.xpose.msra.mxu0 0.0
          %1058 = vmatprep.subr.mxu0 0.0
          %1059 = vmatpush1.xpose.msra.mxu0 0.0
          %1060 = vmatprep.subr.mxu0 0.0
          %1061 = vmatpush1.xpose.msra.mxu0 0.0
          %1062 = vmatprep.subr.mxu0 0.0
          %1063 = vmatpush1.xpose.msra.mxu0 0.0
          %1064 = vmatprep.subr.mxu0 0.0
          %1065 = vmatpush1.xpose.msra.mxu0 0.0
          %1066 = vmatprep.subr.mxu0 0.0
          %1067 = vmatpush1.xpose.msra.mxu0 0.0
          %1068 = vmatprep.subr.mxu0 0.0
          %1069 = vmatpush1.xpose.msra.mxu0 0.0
          %1070 = vmatprep.subr.mxu0 0.0
          %1071 = vmatpush1.xpose.msra.mxu0 0.0
          %1072 = vmatprep.subr.mxu0 0.0
          %1073 = vmatpush1.xpose.msra.mxu0 0.0
          %1074 = vmatprep.subr.mxu0 0.0
          %1075 = vmatpush1.xpose.msra.mxu0 0.0
          %1076 = vmatprep.subr.mxu0 0.0
          %1077 = vmatpush1.xpose.msra.mxu0 0.0
          %1078 = vmatprep.subr.mxu0 0.0
          %1079 = vmatpush1.xpose.msra.mxu0 0.0
          %1080 = vmatprep.subr.mxu0 0.0
          %1081 = vmatpush1.xpose.msra.mxu0 0.0
          %1082 = vmatprep.subr.mxu0 0.0
          %1083 = vmatpush1.xpose.msra.mxu0 0.0
          %1084 = vmatprep.subr.mxu0 0.0
          %1085 = vmatpush1.xpose.msra.mxu0 0.0
          %1086 = vmatprep.subr.mxu0 0.0
          %1087 = vmatpush1.xpose.msra.mxu0 0.0
          %1088 = vmatprep.subr.mxu0 0.0
          %1089 = vmatpush1.xpose.msra.mxu0 0.0
          %1090 = vmatprep.subr.mxu0 0.0
          %1091 = vmatpush1.xpose.msra.mxu0 0.0
          %1092 = vmatprep.subr.mxu0 0.0
          %1093 = vmatpush1.xpose.msra.mxu0 0.0
          %1094 = vmatprep.subr.mxu0 0.0
          %1095 = vmatpush1.xpose.msra.mxu0 0.0
          %1096 = vmatprep.subr.mxu0 0.0
          %1097 = vmatpush1.xpose.msra.mxu0 0.0
          %1098 = vmatprep.subr.mxu0 0.0
          %1099 = vmatpush1.xpose.msra.mxu0 0.0
          %1100 = vmatprep.subr.mxu0 0.0
          %1101 = vmatpush1.xpose.msra.mxu0 0.0
          %1102 = vmatprep.subr.mxu0 0.0
          %1103 = vmatpush1.xpose.msra.mxu0 0.0
          %1104 = vmatprep.subr.mxu0 0.0
          %1105 = vmatpush1.xpose.msra.mxu0 0.0
          %1106 = vmatprep.subr.mxu0 0.0
          %1107 = vmatpush1.xpose.msra.mxu0 0.0
          %1108 = vmatprep.mubr.f32.mxu0 %v1019
          %1109 = vmatmul.mubr.f32.gmra.mrb[0].mxu0 %v1017
          %v1110 = vpop.f32.mrb[0].mxu0
          %v1111 = vadd.f32 0.0, %v1110
          %v1112 = vpop.f32.mrb[0].mxu0
          %1113 = vdwg.mxu0
          %1114 = vmatprep.subr.mxu0 %v1037
          %1115 = vmatpush1.xpose.msra.mxu0 %v288
          %1116 = vmatprep.subr.mxu0 0.0
          %1117 = vmatpush1.xpose.msra.mxu0 0.0
          %1118 = vmatprep.subr.mxu0 0.0
          %1119 = vmatpush1.xpose.msra.mxu0 0.0
          %1120 = vmatprep.subr.mxu0 0.0
          %1121 = vmatpush1.xpose.msra.mxu0 0.0
          %1122 = vmatprep.subr.mxu0 0.0
          %1123 = vmatpush1.xpose.msra.mxu0 0.0
          %1124 = vmatprep.subr.mxu0 0.0
          %1125 = vmatpush1.xpose.msra.mxu0 0.0
          %1126 = vmatprep.subr.mxu0 0.0
          %1127 = vmatpush1.xpose.msra.mxu0 0.0
          %1128 = vmatprep.subr.mxu0 0.0
          %1129 = vmatpush1.xpose.msra.mxu0 0.0
          %1130 = vmatprep.subr.mxu0 0.0
          %1131 = vmatpush1.xpose.msra.mxu0 0.0
          %1132 = vmatprep.subr.mxu0 0.0
          %1133 = vmatpush1.xpose.msra.mxu0 0.0
          %1134 = vmatprep.subr.mxu0 0.0
          %1135 = vmatpush1.xpose.msra.mxu0 0.0
          %1136 = vmatprep.subr.mxu0 0.0
          %1137 = vmatpush1.xpose.msra.mxu0 0.0
          %1138 = vmatprep.subr.mxu0 0.0
          %1139 = vmatpush1.xpose.msra.mxu0 0.0
          %1140 = vmatprep.subr.mxu0 0.0
          %1141 = vmatpush1.xpose.msra.mxu0 0.0
          %1142 = vmatprep.subr.mxu0 0.0
          %1143 = vmatpush1.xpose.msra.mxu0 0.0
          %1144 = vmatprep.subr.mxu0 0.0
          %1145 = vmatpush1.xpose.msra.mxu0 0.0
          %1146 = vmatprep.subr.mxu0 0.0
          %1147 = vmatpush1.xpose.msra.mxu0 0.0
          %1148 = vmatprep.subr.mxu0 0.0
          %1149 = vmatpush1.xpose.msra.mxu0 0.0
          %1150 = vmatprep.subr.mxu0 0.0
          %1151 = vmatpush1.xpose.msra.mxu0 0.0
          %1152 = vmatprep.subr.mxu0 0.0
          %1153 = vmatpush1.xpose.msra.mxu0 0.0
          %1154 = vmatprep.subr.mxu0 0.0
          %1155 = vmatpush1.xpose.msra.mxu0 0.0
          %1156 = vmatprep.subr.mxu0 0.0
          %1157 = vmatpush1.xpose.msra.mxu0 0.0
          %1158 = vmatprep.subr.mxu0 0.0
          %1159 = vmatpush1.xpose.msra.mxu0 0.0
          %1160 = vmatprep.subr.mxu0 0.0
          %1161 = vmatpush1.xpose.msra.mxu0 0.0
          %1162 = vmatprep.subr.mxu0 0.0
          %1163 = vmatpush1.xpose.msra.mxu0 0.0
          %1164 = vmatprep.subr.mxu0 0.0
          %1165 = vmatpush1.xpose.msra.mxu0 0.0
          %1166 = vmatprep.subr.mxu0 0.0
          %1167 = vmatpush1.xpose.msra.mxu0 0.0
          %1168 = vmatprep.subr.mxu0 0.0
          %1169 = vmatpush1.xpose.msra.mxu0 0.0
          %1170 = vmatprep.subr.mxu0 0.0
          %1171 = vmatpush1.xpose.msra.mxu0 0.0
          %1172 = vmatprep.subr.mxu0 0.0
          %1173 = vmatpush1.xpose.msra.mxu0 0.0
          %1174 = vmatprep.subr.mxu0 0.0
          %1175 = vmatpush1.xpose.msra.mxu0 0.0
          %1176 = vmatprep.subr.mxu0 0.0
          %1177 = vmatpush1.xpose.msra.mxu0 0.0
          %1178 = vmatprep.mubr.f32.mxu0 %v1023
          %1179 = vmatmul.mubr.f32.gmra.mrb[0].mxu0 %v1021
          %v1180 = vpop.f32.mrb[0].mxu0
          %v1181 = vadd.f32 %v1111, %v1180
          %v1182 = vpop.f32.mrb[0].mxu0
          %1183 = vdwg.mxu0
          %1184 = vmatprep.subr.mxu0 %v1038
          %1185 = vmatpush1.xpose.msra.mxu0 %v289
          %1186 = vmatprep.subr.mxu0 0.0
          %1187 = vmatpush1.xpose.msra.mxu0 0.0
          %1188 = vmatprep.subr.mxu0 0.0
          %1189 = vmatpush1.xpose.msra.mxu0 0.0
          %1190 = vmatprep.subr.mxu0 0.0
          %1191 = vmatpush1.xpose.msra.mxu0 0.0
          %1192 = vmatprep.subr.mxu0 0.0
          %1193 = vmatpush1.xpose.msra.mxu0 0.0
          %1194 = vmatprep.subr.mxu0 0.0
          %1195 = vmatpush1.xpose.msra.mxu0 0.0
          %1196 = vmatprep.subr.mxu0 0.0
          %1197 = vmatpush1.xpose.msra.mxu0 0.0
          %1198 = vmatprep.subr.mxu0 0.0
          %1199 = vmatpush1.xpose.msra.mxu0 0.0
          %1200 = vmatprep.subr.mxu0 0.0
          %1201 = vmatpush1.xpose.msra.mxu0 0.0
          %1202 = vmatprep.subr.mxu0 0.0
          %1203 = vmatpush1.xpose.msra.mxu0 0.0
          %1204 = vmatprep.subr.mxu0 0.0
          %1205 = vmatpush1.xpose.msra.mxu0 0.0
          %1206 = vmatprep.subr.mxu0 0.0
          %1207 = vmatpush1.xpose.msra.mxu0 0.0
          %1208 = vmatprep.subr.mxu0 0.0
          %1209 = vmatpush1.xpose.msra.mxu0 0.0
          %1210 = vmatprep.subr.mxu0 0.0
          %1211 = vmatpush1.xpose.msra.mxu0 0.0
          %1212 = vmatprep.subr.mxu0 0.0
          %1213 = vmatpush1.xpose.msra.mxu0 0.0
          %1214 = vmatprep.subr.mxu0 0.0
          %1215 = vmatpush1.xpose.msra.mxu0 0.0
          %1216 = vmatprep.subr.mxu0 0.0
          %1217 = vmatpush1.xpose.msra.mxu0 0.0
          %1218 = vmatprep.subr.mxu0 0.0
          %1219 = vmatpush1.xpose.msra.mxu0 0.0
          %1220 = vmatprep.subr.mxu0 0.0
          %1221 = vmatpush1.xpose.msra.mxu0 0.0
          %1222 = vmatprep.subr.mxu0 0.0
          %1223 = vmatpush1.xpose.msra.mxu0 0.0
          %1224 = vmatprep.subr.mxu0 0.0
          %1225 = vmatpush1.xpose.msra.mxu0 0.0
          %1226 = vmatprep.subr.mxu0 0.0
          %1227 = vmatpush1.xpose.msra.mxu0 0.0
          %1228 = vmatprep.subr.mxu0 0.0
          %1229 = vmatpush1.xpose.msra.mxu0 0.0
          %1230 = vmatprep.subr.mxu0 0.0
          %1231 = vmatpush1.xpose.msra.mxu0 0.0
          %1232 = vmatprep.subr.mxu0 0.0
          %1233 = vmatpush1.xpose.msra.mxu0 0.0
          %1234 = vmatprep.subr.mxu0 0.0
          %1235 = vmatpush1.xpose.msra.mxu0 0.0
          %1236 = vmatprep.subr.mxu0 0.0
          %1237 = vmatpush1.xpose.msra.mxu0 0.0
          %1238 = vmatprep.subr.mxu0 0.0
          %1239 = vmatpush1.xpose.msra.mxu0 0.0
          %1240 = vmatprep.subr.mxu0 0.0
          %1241 = vmatpush1.xpose.msra.mxu0 0.0
          %1242 = vmatprep.subr.mxu0 0.0
          %1243 = vmatpush1.xpose.msra.mxu0 0.0
          %1244 = vmatprep.subr.mxu0 0.0
          %1245 = vmatpush1.xpose.msra.mxu0 0.0
          %1246 = vmatprep.subr.mxu0 0.0
          %1247 = vmatpush1.xpose.msra.mxu0 0.0
          %1248 = vmatprep.mubr.f32.mxu0 %v1027
          %1249 = vmatmul.mubr.f32.gmra.mrb[0].mxu0 %v1025
          %v1250 = vpop.f32.mrb[0].mxu0
          %v1251 = vadd.f32 %v1181, %v1250
          %v1252 = vpop.f32.mrb[0].mxu0
          %1253 = vdwg.mxu0
          %1254 = vmatprep.subr.mxu0 %v1039
          %1255 = vmatpush1.xpose.msra.mxu0 %v290
          %1256 = vmatprep.subr.mxu0 0.0
          %1257 = vmatpush1.xpose.msra.mxu0 0.0
          %1258 = vmatprep.subr.mxu0 0.0
          %1259 = vmatpush1.xpose.msra.mxu0 0.0
          %1260 = vmatprep.subr.mxu0 0.0
          %1261 = vmatpush1.xpose.msra.mxu0 0.0
          %1262 = vmatprep.subr.mxu0 0.0
          %1263 = vmatpush1.xpose.msra.mxu0 0.0
          %1264 = vmatprep.subr.mxu0 0.0
          %1265 = vmatpush1.xpose.msra.mxu0 0.0
          %1266 = vmatprep.subr.mxu0 0.0
          %1267 = vmatpush1.xpose.msra.mxu0 0.0
          %1268 = vmatprep.subr.mxu0 0.0
          %1269 = vmatpush1.xpose.msra.mxu0 0.0
          %1270 = vmatprep.subr.mxu0 0.0
          %1271 = vmatpush1.xpose.msra.mxu0 0.0
          %1272 = vmatprep.subr.mxu0 0.0
          %1273 = vmatpush1.xpose.msra.mxu0 0.0
          %1274 = vmatprep.subr.mxu0 0.0
          %1275 = vmatpush1.xpose.msra.mxu0 0.0
          %1276 = vmatprep.subr.mxu0 0.0
          %1277 = vmatpush1.xpose.msra.mxu0 0.0
          %1278 = vmatprep.subr.mxu0 0.0
          %1279 = vmatpush1.xpose.msra.mxu0 0.0
          %1280 = vmatprep.subr.mxu0 0.0
          %1281 = vmatpush1.xpose.msra.mxu0 0.0
          %1282 = vmatprep.subr.mxu0 0.0
          %1283 = vmatpush1.xpose.msra.mxu0 0.0
          %1284 = vmatprep.subr.mxu0 0.0
          %1285 = vmatpush1.xpose.msra.mxu0 0.0
          %1286 = vmatprep.subr.mxu0 0.0
          %1287 = vmatpush1.xpose.msra.mxu0 0.0
          %1288 = vmatprep.subr.mxu0 0.0
          %1289 = vmatpush1.xpose.msra.mxu0 0.0
          %1290 = vmatprep.subr.mxu0 0.0
          %1291 = vmatpush1.xpose.msra.mxu0 0.0
          %1292 = vmatprep.subr.mxu0 0.0
          %1293 = vmatpush1.xpose.msra.mxu0 0.0
          %1294 = vmatprep.subr.mxu0 0.0
          %1295 = vmatpush1.xpose.msra.mxu0 0.0
          %1296 = vmatprep.subr.mxu0 0.0
          %1297 = vmatpush1.xpose.msra.mxu0 0.0
          %1298 = vmatprep.subr.mxu0 0.0
          %1299 = vmatpush1.xpose.msra.mxu0 0.0
          %1300 = vmatprep.subr.mxu0 0.0
          %1301 = vmatpush1.xpose.msra.mxu0 0.0
          %1302 = vmatprep.subr.mxu0 0.0
          %1303 = vmatpush1.xpose.msra.mxu0 0.0
          %1304 = vmatprep.subr.mxu0 0.0
          %1305 = vmatpush1.xpose.msra.mxu0 0.0
          %1306 = vmatprep.subr.mxu0 0.0
          %1307 = vmatpush1.xpose.msra.mxu0 0.0
          %1308 = vmatprep.subr.mxu0 0.0
          %1309 = vmatpush1.xpose.msra.mxu0 0.0
          %1310 = vmatprep.subr.mxu0 0.0
          %1311 = vmatpush1.xpose.msra.mxu0 0.0
          %1312 = vmatprep.subr.mxu0 0.0
          %1313 = vmatpush1.xpose.msra.mxu0 0.0
          %1314 = vmatprep.subr.mxu0 0.0
          %1315 = vmatpush1.xpose.msra.mxu0 0.0
          %1316 = vmatprep.subr.mxu0 0.0
          %1317 = vmatpush1.xpose.msra.mxu0 0.0
          %1318 = vmatprep.mubr.f32.mxu0 %v1031
          %1319 = vmatmul.mubr.f32.gmra.mrb[0].mxu0 %v1029
          %v1320 = vpop.f32.mrb[0].mxu0
          %v1321 = vadd.f32 %v1251, %v1320
          %v1322 = vpop.f32.mrb[0].mxu0
          %1323 = vdwg.mxu0
          %v1324 = vrcp.pop %v1321
          %v1325 = vlaneseq
          %v1326 = vshrl.u32 %v1325, 7
          %v1327 = vsub.s32 0, %v1326
          %v1328 = vrot.slane %v1017, %v1327
          %v1329 = vlaneseq
          %v1330 = vshrl.u32 %v1329, 7
          %v1331 = vsub.s32 0, %v1330
          %v1332 = vrot.slane %v1019, %v1331
          %v1333 = vlaneseq
          %v1334 = vshrl.u32 %v1333, 7
          %v1335 = vsub.s32 0, %v1334
          %v1336 = vrot.slane %v1021, %v1335
          %v1337 = vlaneseq
          %v1338 = vshrl.u32 %v1337, 7
          %v1339 = vsub.s32 0, %v1338
          %v1340 = vrot.slane %v1023, %v1339
          %v1341 = vlaneseq
          %v1342 = vshrl.u32 %v1341, 7
          %v1343 = vsub.s32 0, %v1342
          %v1344 = vrot.slane %v1025, %v1343
          %v1345 = vlaneseq
          %v1346 = vshrl.u32 %v1345, 7
          %v1347 = vsub.s32 0, %v1346
          %v1348 = vrot.slane %v1027, %v1347
          %v1349 = vlaneseq
          %v1350 = vshrl.u32 %v1349, 7
          %v1351 = vsub.s32 0, %v1350
          %v1352 = vrot.slane %v1029, %v1351
          %v1353 = vlaneseq
          %v1354 = vshrl.u32 %v1353, 7
          %v1355 = vsub.s32 0, %v1354
          %v1356 = vrot.slane %v1031, %v1355
          %v1357 = vmul.f32 %v552, %v1328
          %v1358 = vmul.f32 %v554, %v1332
          %v1359 = vmul.f32 %v633, %v1336
          %v1360 = vmul.f32 %v635, %v1340
          %v1361 = vmul.f32 %v714, %v1344
          %v1362 = vmul.f32 %v716, %v1348
          %v1363 = vmul.f32 %v795, %v1352
          %v1364 = vmul.f32 %v797, %v1356
          %v1365 = vmul.f32 %v556, %v1328
          %v1366 = vmul.f32 %v558, %v1332
          %v1367 = vmul.f32 %v637, %v1336
          %v1368 = vmul.f32 %v639, %v1340
          %v1369 = vmul.f32 %v718, %v1344
          %v1370 = vmul.f32 %v720, %v1348
          %v1371 = vmul.f32 %v799, %v1352
          %v1372 = vmul.f32 %v801, %v1356
          %v1373 = vmul.f32 %v562, %v1328
          %v1374 = vmul.f32 %v564, %v1332
          %v1375 = vmul.f32 %v643, %v1336
          %v1376 = vmul.f32 %v645, %v1340
          %v1377 = vmul.f32 %v724, %v1344
          %v1378 = vmul.f32 %v726, %v1348
          %v1379 = vmul.f32 %v805, %v1352
          %v1380 = vmul.f32 %v807, %v1356
          %v1381 = vmul.f32 %v566, %v1328
          %v1382 = vmul.f32 %v568, %v1332
          %v1383 = vmul.f32 %v647, %v1336
          %v1384 = vmul.f32 %v649, %v1340
          %v1385 = vmul.f32 %v728, %v1344
          %v1386 = vmul.f32 %v730, %v1348
          %v1387 = vmul.f32 %v809, %v1352
          %v1388 = vmul.f32 %v811, %v1356
          %1389 = vmatprep.subr.mxu0 %v1036
          %1390 = vmatpush1.xpose.msra.mxu0 %v287
          %1391 = vmatprep.subr.mxu0 0.0
          %1392 = vmatpush1.xpose.msra.mxu0 0.0
          %1393 = vmatprep.subr.mxu0 0.0
          %1394 = vmatpush1.xpose.msra.mxu0 0.0
          %1395 = vmatprep.subr.mxu0 0.0
          %1396 = vmatpush1.xpose.msra.mxu0 0.0
          %1397 = vmatprep.subr.mxu0 0.0
          %1398 = vmatpush1.xpose.msra.mxu0 0.0
          %1399 = vmatprep.subr.mxu0 0.0
          %1400 = vmatpush1.xpose.msra.mxu0 0.0
          %1401 = vmatprep.subr.mxu0 0.0
          %1402 = vmatpush1.xpose.msra.mxu0 0.0
          %1403 = vmatprep.subr.mxu0 0.0
          %1404 = vmatpush1.xpose.msra.mxu0 0.0
          %1405 = vmatprep.subr.mxu0 0.0
          %1406 = vmatpush1.xpose.msra.mxu0 0.0
          %1407 = vmatprep.subr.mxu0 0.0
          %1408 = vmatpush1.xpose.msra.mxu0 0.0
          %1409 = vmatprep.subr.mxu0 0.0
          %1410 = vmatpush1.xpose.msra.mxu0 0.0
          %1411 = vmatprep.subr.mxu0 0.0
          %1412 = vmatpush1.xpose.msra.mxu0 0.0
          %1413 = vmatprep.subr.mxu0 0.0
          %1414 = vmatpush1.xpose.msra.mxu0 0.0
          %1415 = vmatprep.subr.mxu0 0.0
          %1416 = vmatpush1.xpose.msra.mxu0 0.0
          %1417 = vmatprep.subr.mxu0 0.0
          %1418 = vmatpush1.xpose.msra.mxu0 0.0
          %1419 = vmatprep.subr.mxu0 0.0
          %1420 = vmatpush1.xpose.msra.mxu0 0.0
          %1421 = vmatprep.subr.mxu0 0.0
          %1422 = vmatpush1.xpose.msra.mxu0 0.0
          %1423 = vmatprep.subr.mxu0 0.0
          %1424 = vmatpush1.xpose.msra.mxu0 0.0
          %1425 = vmatprep.subr.mxu0 0.0
          %1426 = vmatpush1.xpose.msra.mxu0 0.0
          %1427 = vmatprep.subr.mxu0 0.0
          %1428 = vmatpush1.xpose.msra.mxu0 0.0
          %1429 = vmatprep.subr.mxu0 0.0
          %1430 = vmatpush1.xpose.msra.mxu0 0.0
          %1431 = vmatprep.subr.mxu0 0.0
          %1432 = vmatpush1.xpose.msra.mxu0 0.0
          %1433 = vmatprep.subr.mxu0 0.0
          %1434 = vmatpush1.xpose.msra.mxu0 0.0
          %1435 = vmatprep.subr.mxu0 0.0
          %1436 = vmatpush1.xpose.msra.mxu0 0.0
          %1437 = vmatprep.subr.mxu0 0.0
          %1438 = vmatpush1.xpose.msra.mxu0 0.0
          %1439 = vmatprep.subr.mxu0 0.0
          %1440 = vmatpush1.xpose.msra.mxu0 0.0
          %1441 = vmatprep.subr.mxu0 0.0
          %1442 = vmatpush1.xpose.msra.mxu0 0.0
          %1443 = vmatprep.subr.mxu0 0.0
          %1444 = vmatpush1.xpose.msra.mxu0 0.0
          %1445 = vmatprep.subr.mxu0 0.0
          %1446 = vmatpush1.xpose.msra.mxu0 0.0
          %1447 = vmatprep.subr.mxu0 0.0
          %1448 = vmatpush1.xpose.msra.mxu0 0.0
          %1449 = vmatprep.subr.mxu0 0.0
          %1450 = vmatpush1.xpose.msra.mxu0 0.0
          %1451 = vmatprep.subr.mxu0 0.0
          %1452 = vmatpush1.xpose.msra.mxu0 0.0
          %1453 = vmatprep.mubr.f32.mxu0 %v1358
          %1454 = vmatmul.mubr.f32.gmra.mrb[0].mxu0 %v1357
          %v1455 = vpop.f32.mrb[0].mxu0
          %v1456 = vadd.f32 0.0, %v1455
          %v1457 = vpop.f32.mrb[0].mxu0
          %1458 = vmatprep.mubr.f32.mxu0 %v1366
          %1459 = vmatmul.mubr.f32.gmra.mrb[0].mxu0 %v1365
          %v1460 = vpop.f32.mrb[0].mxu0
          %v1461 = vadd.f32 0.0, %v1460
          %v1462 = vpop.f32.mrb[0].mxu0
          %1463 = vmatprep.mubr.f32.mxu0 %v1374
          %1464 = vmatmul.mubr.f32.gmra.mrb[0].mxu0 %v1373
          %v1465 = vpop.f32.mrb[0].mxu0
          %v1466 = vadd.f32 0.0, %v1465
          %v1467 = vpop.f32.mrb[0].mxu0
          %1468 = vmatprep.mubr.f32.mxu0 %v1382
          %1469 = vmatmul.mubr.f32.gmra.mrb[0].mxu0 %v1381
          %v1470 = vpop.f32.mrb[0].mxu0
          %v1471 = vadd.f32 0.0, %v1470
          %v1472 = vpop.f32.mrb[0].mxu0
          %1473 = vdwg.mxu0
          %1474 = vmatprep.subr.mxu0 %v1037
          %1475 = vmatpush1.xpose.msra.mxu0 %v288
          %1476 = vmatprep.subr.mxu0 0.0
          %1477 = vmatpush1.xpose.msra.mxu0 0.0
          %1478 = vmatprep.subr.mxu0 0.0
          %1479 = vmatpush1.xpose.msra.mxu0 0.0
          %1480 = vmatprep.subr.mxu0 0.0
          %1481 = vmatpush1.xpose.msra.mxu0 0.0
          %1482 = vmatprep.subr.mxu0 0.0
          %1483 = vmatpush1.xpose.msra.mxu0 0.0
          %1484 = vmatprep.subr.mxu0 0.0
          %1485 = vmatpush1.xpose.msra.mxu0 0.0
          %1486 = vmatprep.subr.mxu0 0.0
          %1487 = vmatpush1.xpose.msra.mxu0 0.0
          %1488 = vmatprep.subr.mxu0 0.0
          %1489 = vmatpush1.xpose.msra.mxu0 0.0
          %1490 = vmatprep.subr.mxu0 0.0
          %1491 = vmatpush1.xpose.msra.mxu0 0.0
          %1492 = vmatprep.subr.mxu0 0.0
          %1493 = vmatpush1.xpose.msra.mxu0 0.0
          %1494 = vmatprep.subr.mxu0 0.0
          %1495 = vmatpush1.xpose.msra.mxu0 0.0
          %1496 = vmatprep.subr.mxu0 0.0
          %1497 = vmatpush1.xpose.msra.mxu0 0.0
          %1498 = vmatprep.subr.mxu0 0.0
          %1499 = vmatpush1.xpose.msra.mxu0 0.0
          %1500 = vmatprep.subr.mxu0 0.0
          %1501 = vmatpush1.xpose.msra.mxu0 0.0
          %1502 = vmatprep.subr.mxu0 0.0
          %1503 = vmatpush1.xpose.msra.mxu0 0.0
          %1504 = vmatprep.subr.mxu0 0.0
          %1505 = vmatpush1.xpose.msra.mxu0 0.0
          %1506 = vmatprep.subr.mxu0 0.0
          %1507 = vmatpush1.xpose.msra.mxu0 0.0
          %1508 = vmatprep.subr.mxu0 0.0
          %1509 = vmatpush1.xpose.msra.mxu0 0.0
          %1510 = vmatprep.subr.mxu0 0.0
          %1511 = vmatpush1.xpose.msra.mxu0 0.0
          %1512 = vmatprep.subr.mxu0 0.0
          %1513 = vmatpush1.xpose.msra.mxu0 0.0
          %1514 = vmatprep.subr.mxu0 0.0
          %1515 = vmatpush1.xpose.msra.mxu0 0.0
          %1516 = vmatprep.subr.mxu0 0.0
          %1517 = vmatpush1.xpose.msra.mxu0 0.0
          %1518 = vmatprep.subr.mxu0 0.0
          %1519 = vmatpush1.xpose.msra.mxu0 0.0
          %1520 = vmatprep.subr.mxu0 0.0
          %1521 = vmatpush1.xpose.msra.mxu0 0.0
          %1522 = vmatprep.subr.mxu0 0.0
          %1523 = vmatpush1.xpose.msra.mxu0 0.0
          %1524 = vmatprep.subr.mxu0 0.0
          %1525 = vmatpush1.xpose.msra.mxu0 0.0
          %1526 = vmatprep.subr.mxu0 0.0
          %1527 = vmatpush1.xpose.msra.mxu0 0.0
          %1528 = vmatprep.subr.mxu0 0.0
          %1529 = vmatpush1.xpose.msra.mxu0 0.0
          %1530 = vmatprep.subr.mxu0 0.0
          %1531 = vmatpush1.xpose.msra.mxu0 0.0
          %1532 = vmatprep.subr.mxu0 0.0
          %1533 = vmatpush1.xpose.msra.mxu0 0.0
          %1534 = vmatprep.subr.mxu0 0.0
          %1535 = vmatpush1.xpose.msra.mxu0 0.0
          %1536 = vmatprep.subr.mxu0 0.0
          %1537 = vmatpush1.xpose.msra.mxu0 0.0
          %1538 = vmatprep.mubr.f32.mxu0 %v1360
          %1539 = vmatmul.mubr.f32.gmra.mrb[0].mxu0 %v1359
          %v1540 = vpop.f32.mrb[0].mxu0
          %v1541 = vadd.f32 %v1456, %v1540
          %v1542 = vpop.f32.mrb[0].mxu0
          %1543 = vmatprep.mubr.f32.mxu0 %v1368
          %1544 = vmatmul.mubr.f32.gmra.mrb[0].mxu0 %v1367
          %v1545 = vpop.f32.mrb[0].mxu0
          %v1546 = vadd.f32 %v1461, %v1545
          %v1547 = vpop.f32.mrb[0].mxu0
          %1548 = vmatprep.mubr.f32.mxu0 %v1376
          %1549 = vmatmul.mubr.f32.gmra.mrb[0].mxu0 %v1375
          %v1550 = vpop.f32.mrb[0].mxu0
          %v1551 = vadd.f32 %v1466, %v1550
          %v1552 = vpop.f32.mrb[0].mxu0
          %1553 = vmatprep.mubr.f32.mxu0 %v1384
          %1554 = vmatmul.mubr.f32.gmra.mrb[0].mxu0 %v1383
          %v1555 = vpop.f32.mrb[0].mxu0
          %v1556 = vadd.f32 %v1471, %v1555
          %v1557 = vpop.f32.mrb[0].mxu0
          %1558 = vdwg.mxu0
          %1559 = vmatprep.subr.mxu0 %v1038
          %1560 = vmatpush1.xpose.msra.mxu0 %v289
          %1561 = vmatprep.subr.mxu0 0.0
          %1562 = vmatpush1.xpose.msra.mxu0 0.0
          %1563 = vmatprep.subr.mxu0 0.0
          %1564 = vmatpush1.xpose.msra.mxu0 0.0
          %1565 = vmatprep.subr.mxu0 0.0
          %1566 = vmatpush1.xpose.msra.mxu0 0.0
          %1567 = vmatprep.subr.mxu0 0.0
          %1568 = vmatpush1.xpose.msra.mxu0 0.0
          %1569 = vmatprep.subr.mxu0 0.0
          %1570 = vmatpush1.xpose.msra.mxu0 0.0
          %1571 = vmatprep.subr.mxu0 0.0
          %1572 = vmatpush1.xpose.msra.mxu0 0.0
          %1573 = vmatprep.subr.mxu0 0.0
          %1574 = vmatpush1.xpose.msra.mxu0 0.0
          %1575 = vmatprep.subr.mxu0 0.0
          %1576 = vmatpush1.xpose.msra.mxu0 0.0
          %1577 = vmatprep.subr.mxu0 0.0
          %1578 = vmatpush1.xpose.msra.mxu0 0.0
          %1579 = vmatprep.subr.mxu0 0.0
          %1580 = vmatpush1.xpose.msra.mxu0 0.0
          %1581 = vmatprep.subr.mxu0 0.0
          %1582 = vmatpush1.xpose.msra.mxu0 0.0
          %1583 = vmatprep.subr.mxu0 0.0
          %1584 = vmatpush1.xpose.msra.mxu0 0.0
          %1585 = vmatprep.subr.mxu0 0.0
          %1586 = vmatpush1.xpose.msra.mxu0 0.0
          %1587 = vmatprep.subr.mxu0 0.0
          %1588 = vmatpush1.xpose.msra.mxu0 0.0
          %1589 = vmatprep.subr.mxu0 0.0
          %1590 = vmatpush1.xpose.msra.mxu0 0.0
          %1591 = vmatprep.subr.mxu0 0.0
          %1592 = vmatpush1.xpose.msra.mxu0 0.0
          %1593 = vmatprep.subr.mxu0 0.0
          %1594 = vmatpush1.xpose.msra.mxu0 0.0
          %1595 = vmatprep.subr.mxu0 0.0
          %1596 = vmatpush1.xpose.msra.mxu0 0.0
          %1597 = vmatprep.subr.mxu0 0.0
          %1598 = vmatpush1.xpose.msra.mxu0 0.0
          %1599 = vmatprep.subr.mxu0 0.0
          %1600 = vmatpush1.xpose.msra.mxu0 0.0
          %1601 = vmatprep.subr.mxu0 0.0
          %1602 = vmatpush1.xpose.msra.mxu0 0.0
          %1603 = vmatprep.subr.mxu0 0.0
          %1604 = vmatpush1.xpose.msra.mxu0 0.0
          %1605 = vmatprep.subr.mxu0 0.0
          %1606 = vmatpush1.xpose.msra.mxu0 0.0
          %1607 = vmatprep.subr.mxu0 0.0
          %1608 = vmatpush1.xpose.msra.mxu0 0.0
          %1609 = vmatprep.subr.mxu0 0.0
          %1610 = vmatpush1.xpose.msra.mxu0 0.0
          %1611 = vmatprep.subr.mxu0 0.0
          %1612 = vmatpush1.xpose.msra.mxu0 0.0
          %1613 = vmatprep.subr.mxu0 0.0
          %1614 = vmatpush1.xpose.msra.mxu0 0.0
          %1615 = vmatprep.subr.mxu0 0.0
          %1616 = vmatpush1.xpose.msra.mxu0 0.0
          %1617 = vmatprep.subr.mxu0 0.0
          %1618 = vmatpush1.xpose.msra.mxu0 0.0
          %1619 = vmatprep.subr.mxu0 0.0
          %1620 = vmatpush1.xpose.msra.mxu0 0.0
          %1621 = vmatprep.subr.mxu0 0.0
          %1622 = vmatpush1.xpose.msra.mxu0 0.0
          %1623 = vmatprep.mubr.f32.mxu0 %v1362
          %1624 = vmatmul.mubr.f32.gmra.mrb[0].mxu0 %v1361
          %v1625 = vpop.f32.mrb[0].mxu0
          %v1626 = vadd.f32 %v1541, %v1625
          %v1627 = vpop.f32.mrb[0].mxu0
          %1628 = vmatprep.mubr.f32.mxu0 %v1370
          %1629 = vmatmul.mubr.f32.gmra.mrb[0].mxu0 %v1369
          %v1630 = vpop.f32.mrb[0].mxu0
          %v1631 = vadd.f32 %v1546, %v1630
          %v1632 = vpop.f32.mrb[0].mxu0
          %1633 = vmatprep.mubr.f32.mxu0 %v1378
          %1634 = vmatmul.mubr.f32.gmra.mrb[0].mxu0 %v1377
          %v1635 = vpop.f32.mrb[0].mxu0
          %v1636 = vadd.f32 %v1551, %v1635
          %v1637 = vpop.f32.mrb[0].mxu0
          %1638 = vmatprep.mubr.f32.mxu0 %v1386
          %1639 = vmatmul.mubr.f32.gmra.mrb[0].mxu0 %v1385
          %v1640 = vpop.f32.mrb[0].mxu0
          %v1641 = vadd.f32 %v1556, %v1640
          %v1642 = vpop.f32.mrb[0].mxu0
          %1643 = vdwg.mxu0
          %1644 = vmatprep.subr.mxu0 %v1039
          %1645 = vmatpush1.xpose.msra.mxu0 %v290
          %1646 = vmatprep.subr.mxu0 0.0
          %1647 = vmatpush1.xpose.msra.mxu0 0.0
          %1648 = vmatprep.subr.mxu0 0.0
          %1649 = vmatpush1.xpose.msra.mxu0 0.0
          %1650 = vmatprep.subr.mxu0 0.0
          %1651 = vmatpush1.xpose.msra.mxu0 0.0
          %1652 = vmatprep.subr.mxu0 0.0
          %1653 = vmatpush1.xpose.msra.mxu0 0.0
          %1654 = vmatprep.subr.mxu0 0.0
          %1655 = vmatpush1.xpose.msra.mxu0 0.0
          %1656 = vmatprep.subr.mxu0 0.0
          %1657 = vmatpush1.xpose.msra.mxu0 0.0
          %1658 = vmatprep.subr.mxu0 0.0
          %1659 = vmatpush1.xpose.msra.mxu0 0.0
          %1660 = vmatprep.subr.mxu0 0.0
          %1661 = vmatpush1.xpose.msra.mxu0 0.0
          %1662 = vmatprep.subr.mxu0 0.0
          %1663 = vmatpush1.xpose.msra.mxu0 0.0
          %1664 = vmatprep.subr.mxu0 0.0
          %1665 = vmatpush1.xpose.msra.mxu0 0.0
          %1666 = vmatprep.subr.mxu0 0.0
          %1667 = vmatpush1.xpose.msra.mxu0 0.0
          %1668 = vmatprep.subr.mxu0 0.0
          %1669 = vmatpush1.xpose.msra.mxu0 0.0
          %1670 = vmatprep.subr.mxu0 0.0
          %1671 = vmatpush1.xpose.msra.mxu0 0.0
          %1672 = vmatprep.subr.mxu0 0.0
          %1673 = vmatpush1.xpose.msra.mxu0 0.0
          %1674 = vmatprep.subr.mxu0 0.0
          %1675 = vmatpush1.xpose.msra.mxu0 0.0
          %1676 = vmatprep.subr.mxu0 0.0
          %1677 = vmatpush1.xpose.msra.mxu0 0.0
          %1678 = vmatprep.subr.mxu0 0.0
          %1679 = vmatpush1.xpose.msra.mxu0 0.0
          %1680 = vmatprep.subr.mxu0 0.0
          %1681 = vmatpush1.xpose.msra.mxu0 0.0
          %1682 = vmatprep.subr.mxu0 0.0
          %1683 = vmatpush1.xpose.msra.mxu0 0.0
          %1684 = vmatprep.subr.mxu0 0.0
          %1685 = vmatpush1.xpose.msra.mxu0 0.0
          %1686 = vmatprep.subr.mxu0 0.0
          %1687 = vmatpush1.xpose.msra.mxu0 0.0
          %1688 = vmatprep.subr.mxu0 0.0
          %1689 = vmatpush1.xpose.msra.mxu0 0.0
          %1690 = vmatprep.subr.mxu0 0.0
          %1691 = vmatpush1.xpose.msra.mxu0 0.0
          %1692 = vmatprep.subr.mxu0 0.0
          %1693 = vmatpush1.xpose.msra.mxu0 0.0
          %1694 = vmatprep.subr.mxu0 0.0
          %1695 = vmatpush1.xpose.msra.mxu0 0.0
          %1696 = vmatprep.subr.mxu0 0.0
          %1697 = vmatpush1.xpose.msra.mxu0 0.0
          %1698 = vmatprep.subr.mxu0 0.0
          %1699 = vmatpush1.xpose.msra.mxu0 0.0
          %1700 = vmatprep.subr.mxu0 0.0
          %1701 = vmatpush1.xpose.msra.mxu0 0.0
          %1702 = vmatprep.subr.mxu0 0.0
          %1703 = vmatpush1.xpose.msra.mxu0 0.0
          %1704 = vmatprep.subr.mxu0 0.0
          %1705 = vmatpush1.xpose.msra.mxu0 0.0
          %1706 = vmatprep.subr.mxu0 0.0
          %1707 = vmatpush1.xpose.msra.mxu0 0.0
          %1708 = vmatprep.mubr.f32.mxu0 %v1364
          %1709 = vmatmul.mubr.f32.gmra.mrb[0].mxu0 %v1363
          %v1710 = vpop.f32.mrb[0].mxu0
          %v1711 = vadd.f32 %v1626, %v1710
          %v1712 = vpop.f32.mrb[0].mxu0
          %1713 = vmatprep.mubr.f32.mxu0 %v1372
          %1714 = vmatmul.mubr.f32.gmra.mrb[0].mxu0 %v1371
          %v1715 = vpop.f32.mrb[0].mxu0
          %v1716 = vadd.f32 %v1631, %v1715
          %v1717 = vpop.f32.mrb[0].mxu0
          %1718 = vmatprep.mubr.f32.mxu0 %v1380
          %1719 = vmatmul.mubr.f32.gmra.mrb[0].mxu0 %v1379
          %v1720 = vpop.f32.mrb[0].mxu0
          %v1721 = vadd.f32 %v1636, %v1720
          %v1722 = vpop.f32.mrb[0].mxu0
          %1723 = vmatprep.mubr.f32.mxu0 %v1388
          %1724 = vmatmul.mubr.f32.gmra.mrb[0].mxu0 %v1387
          %v1725 = vpop.f32.mrb[0].mxu0
          %v1726 = vadd.f32 %v1641, %v1725
          %v1727 = vpop.f32.mrb[0].mxu0
          %1728 = vdwg.mxu0
          %v1729 = vlaneseq
          %v1730 = vshrl.u32 %v1729, 7
          %v1731 = vsub.s32 0, %v1730
          %v1732 = vrot.slane %v1324, %v1731
          %v1733 = vmul.f32 %v1711, %v1732
          %v1734 = vmul.f32 %v1716, %v1732
          %v1735 = vmul.f32 %v1721, %v1732
          %v1736 = vmul.f32 %v1726, %v1732
          %vm1737 = vcmask 31744
          %v1739 = vsel %vm1737, %v1733, 0
          %v1742 = vsel %vm1737, %v1734, 0
          %v1745 = vsel %vm1737, %v1735, 0
          %v1748 = vsel %vm1737, %v1736, 0
          %v1750 = vsel %vm909, %v287, 0
          %v1752 = vsel %vm909, %v1036, 0
          %v1754 = vsel %vm909, %v288, 0
          %v1756 = vsel %vm909, %v1037, 0
          %v1758 = vsel %vm909, %v289, 0
          %v1760 = vsel %vm909, %v1038, 0
          %v1762 = vsel %vm909, %v290, 0
          %v1764 = vsel %vm909, %v1039, 0
          %1766 = vmatprep.subr.mxu0 %v1752
          %1767 = vmatpush1.msra.mxu0 %v1750
          %1768 = vmatprep.subr.mxu0 0.0
          %1769 = vmatpush1.msra.mxu0 0.0
          %1770 = vmatprep.subr.mxu0 0.0
          %1771 = vmatpush1.msra.mxu0 0.0
          %1772 = vmatprep.subr.mxu0 0.0
          %1773 = vmatpush1.msra.mxu0 0.0
          %1774 = vmatprep.subr.mxu0 0.0
          %1775 = vmatpush1.msra.mxu0 0.0
          %1776 = vmatprep.subr.mxu0 0.0
          %1777 = vmatpush1.msra.mxu0 0.0
          %1778 = vmatprep.subr.mxu0 0.0
          %1779 = vmatpush1.msra.mxu0 0.0
          %1780 = vmatprep.subr.mxu0 0.0
          %1781 = vmatpush1.msra.mxu0 0.0
          %1782 = vmatprep.subr.mxu0 0.0
          %1783 = vmatpush1.msra.mxu0 0.0
          %1784 = vmatprep.subr.mxu0 0.0
          %1785 = vmatpush1.msra.mxu0 0.0
          %1786 = vmatprep.subr.mxu0 0.0
          %1787 = vmatpush1.msra.mxu0 0.0
          %1788 = vmatprep.subr.mxu0 0.0
          %1789 = vmatpush1.msra.mxu0 0.0
          %1790 = vmatprep.subr.mxu0 0.0
          %1791 = vmatpush1.msra.mxu0 0.0
          %1792 = vmatprep.subr.mxu0 0.0
          %1793 = vmatpush1.msra.mxu0 0.0
          %1794 = vmatprep.subr.mxu0 0.0
          %1795 = vmatpush1.msra.mxu0 0.0
          %1796 = vmatprep.subr.mxu0 0.0
          %1797 = vmatpush1.msra.mxu0 0.0
          %1798 = vmatprep.subr.mxu0 0.0
          %1799 = vmatpush1.msra.mxu0 0.0
          %1800 = vmatprep.subr.mxu0 0.0
          %1801 = vmatpush1.msra.mxu0 0.0
          %1802 = vmatprep.subr.mxu0 0.0
          %1803 = vmatpush1.msra.mxu0 0.0
          %1804 = vmatprep.subr.mxu0 0.0
          %1805 = vmatpush1.msra.mxu0 0.0
          %1806 = vmatprep.subr.mxu0 0.0
          %1807 = vmatpush1.msra.mxu0 0.0
          %1808 = vmatprep.subr.mxu0 0.0
          %1809 = vmatpush1.msra.mxu0 0.0
          %1810 = vmatprep.subr.mxu0 0.0
          %1811 = vmatpush1.msra.mxu0 0.0
          %1812 = vmatprep.subr.mxu0 0.0
          %1813 = vmatpush1.msra.mxu0 0.0
          %1814 = vmatprep.subr.mxu0 0.0
          %1815 = vmatpush1.msra.mxu0 0.0
          %1816 = vmatprep.subr.mxu0 0.0
          %1817 = vmatpush1.msra.mxu0 0.0
          %1818 = vmatprep.subr.mxu0 0.0
          %1819 = vmatpush1.msra.mxu0 0.0
          %1820 = vmatprep.subr.mxu0 0.0
          %1821 = vmatpush1.msra.mxu0 0.0
          %1822 = vmatprep.subr.mxu0 0.0
          %1823 = vmatpush1.msra.mxu0 0.0
          %1824 = vmatprep.subr.mxu0 0.0
          %1825 = vmatpush1.msra.mxu0 0.0
          %1826 = vmatprep.subr.mxu0 0.0
          %1827 = vmatpush1.msra.mxu0 0.0
          %1828 = vmatprep.subr.mxu0 0.0
          %1829 = vmatpush1.msra.mxu0 0.0
          %1830 = vmatprep.mubr.f32.mxu0 0.0
          %1831 = vmatmul.mubr.f32.gmra.mrb[0].mxu0 %v1739
          %v1832 = vpop.f32.mrb[0].mxu0
          %v1833 = vadd.f32 0.0, %v1832
          %v1834 = vpop.f32.mrb[0].mxu0
          %v1835 = vadd.f32 0.0, %v1834
          %1836 = vmatprep.mubr.f32.mxu0 0.0
          %1837 = vmatmul.mubr.f32.gmra.mrb[0].mxu0 %v1742
          %v1838 = vpop.f32.mrb[0].mxu0
          %v1839 = vadd.f32 0.0, %v1838
          %v1840 = vpop.f32.mrb[0].mxu0
          %v1841 = vadd.f32 0.0, %v1840
          %1842 = vmatprep.mubr.f32.mxu0 0.0
          %1843 = vmatmul.mubr.f32.gmra.mrb[0].mxu0 %v1745
          %v1844 = vpop.f32.mrb[0].mxu0
          %v1845 = vadd.f32 0.0, %v1844
          %v1846 = vpop.f32.mrb[0].mxu0
          %v1847 = vadd.f32 0.0, %v1846
          %1848 = vmatprep.mubr.f32.mxu0 0.0
          %1849 = vmatmul.mubr.f32.gmra.mrb[0].mxu0 %v1748
          %v1850 = vpop.f32.mrb[0].mxu0
          %v1851 = vadd.f32 0.0, %v1850
          %v1852 = vpop.f32.mrb[0].mxu0
          %v1853 = vadd.f32 0.0, %v1852
          %1854 = vdwg.mxu0
          %1855 = vmatprep.subr.mxu0 %v1756
          %1856 = vmatpush1.msra.mxu0 %v1754
          %1857 = vmatprep.subr.mxu0 0.0
          %1858 = vmatpush1.msra.mxu0 0.0
          %1859 = vmatprep.subr.mxu0 0.0
          %1860 = vmatpush1.msra.mxu0 0.0
          %1861 = vmatprep.subr.mxu0 0.0
          %1862 = vmatpush1.msra.mxu0 0.0
          %1863 = vmatprep.subr.mxu0 0.0
          %1864 = vmatpush1.msra.mxu0 0.0
          %1865 = vmatprep.subr.mxu0 0.0
          %1866 = vmatpush1.msra.mxu0 0.0
          %1867 = vmatprep.subr.mxu0 0.0
          %1868 = vmatpush1.msra.mxu0 0.0
          %1869 = vmatprep.subr.mxu0 0.0
          %1870 = vmatpush1.msra.mxu0 0.0
          %1871 = vmatprep.subr.mxu0 0.0
          %1872 = vmatpush1.msra.mxu0 0.0
          %1873 = vmatprep.subr.mxu0 0.0
          %1874 = vmatpush1.msra.mxu0 0.0
          %1875 = vmatprep.subr.mxu0 0.0
          %1876 = vmatpush1.msra.mxu0 0.0
          %1877 = vmatprep.subr.mxu0 0.0
          %1878 = vmatpush1.msra.mxu0 0.0
          %1879 = vmatprep.subr.mxu0 0.0
          %1880 = vmatpush1.msra.mxu0 0.0
          %1881 = vmatprep.subr.mxu0 0.0
          %1882 = vmatpush1.msra.mxu0 0.0
          %1883 = vmatprep.subr.mxu0 0.0
          %1884 = vmatpush1.msra.mxu0 0.0
          %1885 = vmatprep.subr.mxu0 0.0
          %1886 = vmatpush1.msra.mxu0 0.0
          %1887 = vmatprep.subr.mxu0 0.0
          %1888 = vmatpush1.msra.mxu0 0.0
          %1889 = vmatprep.subr.mxu0 0.0
          %1890 = vmatpush1.msra.mxu0 0.0
          %1891 = vmatprep.subr.mxu0 0.0
          %1892 = vmatpush1.msra.mxu0 0.0
          %1893 = vmatprep.subr.mxu0 0.0
          %1894 = vmatpush1.msra.mxu0 0.0
          %1895 = vmatprep.subr.mxu0 0.0
          %1896 = vmatpush1.msra.mxu0 0.0
          %1897 = vmatprep.subr.mxu0 0.0
          %1898 = vmatpush1.msra.mxu0 0.0
          %1899 = vmatprep.subr.mxu0 0.0
          %1900 = vmatpush1.msra.mxu0 0.0
          %1901 = vmatprep.subr.mxu0 0.0
          %1902 = vmatpush1.msra.mxu0 0.0
          %1903 = vmatprep.subr.mxu0 0.0
          %1904 = vmatpush1.msra.mxu0 0.0
          %1905 = vmatprep.subr.mxu0 0.0
          %1906 = vmatpush1.msra.mxu0 0.0
          %1907 = vmatprep.subr.mxu0 0.0
          %1908 = vmatpush1.msra.mxu0 0.0
          %1909 = vmatprep.subr.mxu0 0.0
          %1910 = vmatpush1.msra.mxu0 0.0
          %1911 = vmatprep.subr.mxu0 0.0
          %1912 = vmatpush1.msra.mxu0 0.0
          %1913 = vmatprep.subr.mxu0 0.0
          %1914 = vmatpush1.msra.mxu0 0.0
          %1915 = vmatprep.subr.mxu0 0.0
          %1916 = vmatpush1.msra.mxu0 0.0
          %1917 = vmatprep.subr.mxu0 0.0
          %1918 = vmatpush1.msra.mxu0 0.0
          %1919 = vmatprep.mubr.f32.mxu0 0.0
          %1920 = vmatmul.mubr.f32.gmra.mrb[0].mxu0 %v1739
          %v1921 = vpop.f32.mrb[0].mxu0
          %v1922 = vadd.f32 0.0, %v1921
          %v1923 = vpop.f32.mrb[0].mxu0
          %v1924 = vadd.f32 0.0, %v1923
          %1925 = vmatprep.mubr.f32.mxu0 0.0
          %1926 = vmatmul.mubr.f32.gmra.mrb[0].mxu0 %v1742
          %v1927 = vpop.f32.mrb[0].mxu0
          %v1928 = vadd.f32 0.0, %v1927
          %v1929 = vpop.f32.mrb[0].mxu0
          %v1930 = vadd.f32 0.0, %v1929
          %1931 = vmatprep.mubr.f32.mxu0 0.0
          %1932 = vmatmul.mubr.f32.gmra.mrb[0].mxu0 %v1745
          %v1933 = vpop.f32.mrb[0].mxu0
          %v1934 = vadd.f32 0.0, %v1933
          %v1935 = vpop.f32.mrb[0].mxu0
          %v1936 = vadd.f32 0.0, %v1935
          %1937 = vmatprep.mubr.f32.mxu0 0.0
          %1938 = vmatmul.mubr.f32.gmra.mrb[0].mxu0 %v1748
          %v1939 = vpop.f32.mrb[0].mxu0
          %v1940 = vadd.f32 0.0, %v1939
          %v1941 = vpop.f32.mrb[0].mxu0
          %v1942 = vadd.f32 0.0, %v1941
          %1943 = vdwg.mxu0
          %1944 = vmatprep.subr.mxu0 %v1760
          %1945 = vmatpush1.msra.mxu0 %v1758
          %1946 = vmatprep.subr.mxu0 0.0
          %1947 = vmatpush1.msra.mxu0 0.0
          %1948 = vmatprep.subr.mxu0 0.0
          %1949 = vmatpush1.msra.mxu0 0.0
          %1950 = vmatprep.subr.mxu0 0.0
          %1951 = vmatpush1.msra.mxu0 0.0
          %1952 = vmatprep.subr.mxu0 0.0
          %1953 = vmatpush1.msra.mxu0 0.0
          %1954 = vmatprep.subr.mxu0 0.0
          %1955 = vmatpush1.msra.mxu0 0.0
          %1956 = vmatprep.subr.mxu0 0.0
          %1957 = vmatpush1.msra.mxu0 0.0
          %1958 = vmatprep.subr.mxu0 0.0
          %1959 = vmatpush1.msra.mxu0 0.0
          %1960 = vmatprep.subr.mxu0 0.0
          %1961 = vmatpush1.msra.mxu0 0.0
          %1962 = vmatprep.subr.mxu0 0.0
          %1963 = vmatpush1.msra.mxu0 0.0
          %1964 = vmatprep.subr.mxu0 0.0
          %1965 = vmatpush1.msra.mxu0 0.0
          %1966 = vmatprep.subr.mxu0 0.0
          %1967 = vmatpush1.msra.mxu0 0.0
          %1968 = vmatprep.subr.mxu0 0.0
          %1969 = vmatpush1.msra.mxu0 0.0
          %1970 = vmatprep.subr.mxu0 0.0
          %1971 = vmatpush1.msra.mxu0 0.0
          %1972 = vmatprep.subr.mxu0 0.0
          %1973 = vmatpush1.msra.mxu0 0.0
          %1974 = vmatprep.subr.mxu0 0.0
          %1975 = vmatpush1.msra.mxu0 0.0
          %1976 = vmatprep.subr.mxu0 0.0
          %1977 = vmatpush1.msra.mxu0 0.0
          %1978 = vmatprep.subr.mxu0 0.0
          %1979 = vmatpush1.msra.mxu0 0.0
          %1980 = vmatprep.subr.mxu0 0.0
          %1981 = vmatpush1.msra.mxu0 0.0
          %1982 = vmatprep.subr.mxu0 0.0
          %1983 = vmatpush1.msra.mxu0 0.0
          %1984 = vmatprep.subr.mxu0 0.0
          %1985 = vmatpush1.msra.mxu0 0.0
          %1986 = vmatprep.subr.mxu0 0.0
          %1987 = vmatpush1.msra.mxu0 0.0
          %1988 = vmatprep.subr.mxu0 0.0
          %1989 = vmatpush1.msra.mxu0 0.0
          %1990 = vmatprep.subr.mxu0 0.0
          %1991 = vmatpush1.msra.mxu0 0.0
          %1992 = vmatprep.subr.mxu0 0.0
          %1993 = vmatpush1.msra.mxu0 0.0
          %1994 = vmatprep.subr.mxu0 0.0
          %1995 = vmatpush1.msra.mxu0 0.0
          %1996 = vmatprep.subr.mxu0 0.0
          %1997 = vmatpush1.msra.mxu0 0.0
          %1998 = vmatprep.subr.mxu0 0.0
          %1999 = vmatpush1.msra.mxu0 0.0
          %2000 = vmatprep.subr.mxu0 0.0
          %2001 = vmatpush1.msra.mxu0 0.0
          %2002 = vmatprep.subr.mxu0 0.0
          %2003 = vmatpush1.msra.mxu0 0.0
          %2004 = vmatprep.subr.mxu0 0.0
          %2005 = vmatpush1.msra.mxu0 0.0
          %2006 = vmatprep.subr.mxu0 0.0
          %2007 = vmatpush1.msra.mxu0 0.0
          %2008 = vmatprep.mubr.f32.mxu0 0.0
          %2009 = vmatmul.mubr.f32.gmra.mrb[0].mxu0 %v1739
          %v2010 = vpop.f32.mrb[0].mxu0
          %v2011 = vadd.f32 0.0, %v2010
          %v2012 = vpop.f32.mrb[0].mxu0
          %v2013 = vadd.f32 0.0, %v2012
          %2014 = vmatprep.mubr.f32.mxu0 0.0
          %2015 = vmatmul.mubr.f32.gmra.mrb[0].mxu0 %v1742
          %v2016 = vpop.f32.mrb[0].mxu0
          %v2017 = vadd.f32 0.0, %v2016
          %v2018 = vpop.f32.mrb[0].mxu0
          %v2019 = vadd.f32 0.0, %v2018
          %2020 = vmatprep.mubr.f32.mxu0 0.0
          %2021 = vmatmul.mubr.f32.gmra.mrb[0].mxu0 %v1745
          %v2022 = vpop.f32.mrb[0].mxu0
          %v2023 = vadd.f32 0.0, %v2022
          %v2024 = vpop.f32.mrb[0].mxu0
          %v2025 = vadd.f32 0.0, %v2024
          %2026 = vmatprep.mubr.f32.mxu0 0.0
          %2027 = vmatmul.mubr.f32.gmra.mrb[0].mxu0 %v1748
          %v2028 = vpop.f32.mrb[0].mxu0
          %v2029 = vadd.f32 0.0, %v2028
          %v2030 = vpop.f32.mrb[0].mxu0
          %v2031 = vadd.f32 0.0, %v2030
          %2032 = vdwg.mxu0
          %2033 = vmatprep.subr.mxu0 %v1764
          %2034 = vmatpush1.msra.mxu0 %v1762
          %2035 = vmatprep.subr.mxu0 0.0
          %2036 = vmatpush1.msra.mxu0 0.0
          %2037 = vmatprep.subr.mxu0 0.0
          %2038 = vmatpush1.msra.mxu0 0.0
          %2039 = vmatprep.subr.mxu0 0.0
          %2040 = vmatpush1.msra.mxu0 0.0
          %2041 = vmatprep.subr.mxu0 0.0
          %2042 = vmatpush1.msra.mxu0 0.0
          %2043 = vmatprep.subr.mxu0 0.0
          %2044 = vmatpush1.msra.mxu0 0.0
          %2045 = vmatprep.subr.mxu0 0.0
          %2046 = vmatpush1.msra.mxu0 0.0
          %2047 = vmatprep.subr.mxu0 0.0
          %2048 = vmatpush1.msra.mxu0 0.0
          %2049 = vmatprep.subr.mxu0 0.0
          %2050 = vmatpush1.msra.mxu0 0.0
          %2051 = vmatprep.subr.mxu0 0.0
          %2052 = vmatpush1.msra.mxu0 0.0
          %2053 = vmatprep.subr.mxu0 0.0
          %2054 = vmatpush1.msra.mxu0 0.0
          %2055 = vmatprep.subr.mxu0 0.0
          %2056 = vmatpush1.msra.mxu0 0.0
          %2057 = vmatprep.subr.mxu0 0.0
          %2058 = vmatpush1.msra.mxu0 0.0
          %2059 = vmatprep.subr.mxu0 0.0
          %2060 = vmatpush1.msra.mxu0 0.0
          %2061 = vmatprep.subr.mxu0 0.0
          %2062 = vmatpush1.msra.mxu0 0.0
          %2063 = vmatprep.subr.mxu0 0.0
          %2064 = vmatpush1.msra.mxu0 0.0
          %2065 = vmatprep.subr.mxu0 0.0
          %2066 = vmatpush1.msra.mxu0 0.0
          %2067 = vmatprep.subr.mxu0 0.0
          %2068 = vmatpush1.msra.mxu0 0.0
          %2069 = vmatprep.subr.mxu0 0.0
          %2070 = vmatpush1.msra.mxu0 0.0
          %2071 = vmatprep.subr.mxu0 0.0
          %2072 = vmatpush1.msra.mxu0 0.0
          %2073 = vmatprep.subr.mxu0 0.0
          %2074 = vmatpush1.msra.mxu0 0.0
          %2075 = vmatprep.subr.mxu0 0.0
          %2076 = vmatpush1.msra.mxu0 0.0
          %2077 = vmatprep.subr.mxu0 0.0
          %2078 = vmatpush1.msra.mxu0 0.0
          %2079 = vmatprep.subr.mxu0 0.0
          %2080 = vmatpush1.msra.mxu0 0.0
          %2081 = vmatprep.subr.mxu0 0.0
          %2082 = vmatpush1.msra.mxu0 0.0
          %2083 = vmatprep.subr.mxu0 0.0
          %2084 = vmatpush1.msra.mxu0 0.0
          %2085 = vmatprep.subr.mxu0 0.0
          %2086 = vmatpush1.msra.mxu0 0.0
          %2087 = vmatprep.subr.mxu0 0.0
          %2088 = vmatpush1.msra.mxu0 0.0
          %2089 = vmatprep.subr.mxu0 0.0
          %2090 = vmatpush1.msra.mxu0 0.0
          %2091 = vmatprep.subr.mxu0 0.0
          %2092 = vmatpush1.msra.mxu0 0.0
          %2093 = vmatprep.subr.mxu0 0.0
          %2094 = vmatpush1.msra.mxu0 0.0
          %2095 = vmatprep.subr.mxu0 0.0
          %2096 = vmatpush1.msra.mxu0 0.0
          %2097 = vmatprep.mubr.f32.mxu0 0.0
          %2098 = vmatmul.mubr.f32.gmra.mrb[0].mxu0 %v1739
          %v2099 = vpop.f32.mrb[0].mxu0
          %v2100 = vadd.f32 0.0, %v2099
          %v2101 = vpop.f32.mrb[0].mxu0
          %v2102 = vadd.f32 0.0, %v2101
          %2103 = vmatprep.mubr.f32.mxu0 0.0
          %2104 = vmatmul.mubr.f32.gmra.mrb[0].mxu0 %v1742
          %v2105 = vpop.f32.mrb[0].mxu0
          %v2106 = vadd.f32 0.0, %v2105
          %v2107 = vpop.f32.mrb[0].mxu0
          %v2108 = vadd.f32 0.0, %v2107
          %2109 = vmatprep.mubr.f32.mxu0 0.0
          %2110 = vmatmul.mubr.f32.gmra.mrb[0].mxu0 %v1745
          %v2111 = vpop.f32.mrb[0].mxu0
          %v2112 = vadd.f32 0.0, %v2111
          %v2113 = vpop.f32.mrb[0].mxu0
          %v2114 = vadd.f32 0.0, %v2113
          %2115 = vmatprep.mubr.f32.mxu0 0.0
          %2116 = vmatmul.mubr.f32.gmra.mrb[0].mxu0 %v1748
          %v2117 = vpop.f32.mrb[0].mxu0
          %v2118 = vadd.f32 0.0, %v2117
          %v2119 = vpop.f32.mrb[0].mxu0
          %v2120 = vadd.f32 0.0, %v2119
          %2121 = vdwg.mxu0
          %v2122 = vmax.f32 %v572, 0.0
          %v2123 = vmax.f32 %v574, 0.0
          %v2124 = vmax.f32 %v653, 0.0
          %v2125 = vmax.f32 %v655, 0.0
          %v2126 = vmax.f32 %v734, 0.0
          %v2127 = vmax.f32 %v736, 0.0
          %v2128 = vmax.f32 %v815, 0.0
          %v2129 = vmax.f32 %v817, 0.0
          %v2130 = vmax.f32 %v576, 0.0
          %v2131 = vmax.f32 %v578, 0.0
          %v2132 = vmax.f32 %v657, 0.0
          %v2133 = vmax.f32 %v659, 0.0
          %v2134 = vmax.f32 %v738, 0.0
          %v2135 = vmax.f32 %v740, 0.0
          %v2136 = vmax.f32 %v819, 0.0
          %v2137 = vmax.f32 %v821, 0.0
          %v2138 = vmax.f32 %v582, 0.0
          %v2139 = vmax.f32 %v584, 0.0
          %v2140 = vmax.f32 %v663, 0.0
          %v2141 = vmax.f32 %v665, 0.0
          %v2142 = vmax.f32 %v744, 0.0
          %v2143 = vmax.f32 %v746, 0.0
          %v2144 = vmax.f32 %v825, 0.0
          %v2145 = vmax.f32 %v827, 0.0
          %v2146 = vmax.f32 %v586, 0.0
          %v2147 = vmax.f32 %v588, 0.0
          %v2148 = vmax.f32 %v667, 0.0
          %v2149 = vmax.f32 %v669, 0.0
          %v2150 = vmax.f32 %v748, 0.0
          %v2151 = vmax.f32 %v750, 0.0
          %v2152 = vmax.f32 %v829, 0.0
          %v2153 = vmax.f32 %v831, 0.0
          %v2154 = vmul.f32 %v2122, %v1833
          %v2155 = vmul.f32 %v2123, %v1835
          %v2156 = vmul.f32 %v2124, %v1922
          %v2157 = vmul.f32 %v2125, %v1924
          %v2158 = vmul.f32 %v2126, %v2011
          %v2159 = vmul.f32 %v2127, %v2013
          %v2160 = vmul.f32 %v2128, %v2100
          %v2161 = vmul.f32 %v2129, %v2102
          %v2162 = vmul.f32 %v2130, %v1839
          %v2163 = vmul.f32 %v2131, %v1841
          %v2164 = vmul.f32 %v2132, %v1928
          %v2165 = vmul.f32 %v2133, %v1930
          %v2166 = vmul.f32 %v2134, %v2017
          %v2167 = vmul.f32 %v2135, %v2019
          %v2168 = vmul.f32 %v2136, %v2106
          %v2169 = vmul.f32 %v2137, %v2108
          %v2170 = vmul.f32 %v2138, %v1845
          %v2171 = vmul.f32 %v2139, %v1847
          %v2172 = vmul.f32 %v2140, %v1934
          %v2173 = vmul.f32 %v2141, %v1936
          %v2174 = vmul.f32 %v2142, %v2023
          %v2175 = vmul.f32 %v2143, %v2025
          %v2176 = vmul.f32 %v2144, %v2112
          %v2177 = vmul.f32 %v2145, %v2114
          %v2178 = vmul.f32 %v2146, %v1851
          %v2179 = vmul.f32 %v2147, %v1853
          %v2180 = vmul.f32 %v2148, %v1940
          %v2181 = vmul.f32 %v2149, %v1942
          %v2182 = vmul.f32 %v2150, %v2029
          %v2183 = vmul.f32 %v2151, %v2031
          %v2184 = vmul.f32 %v2152, %v2118
          %v2185 = vmul.f32 %v2153, %v2120
          %v2186 = vpack.c.bf16 %v2162, %v2154
          %v2187 = vpack.c.bf16 %v2163, %v2155
          %v2188 = vpack.c.bf16 %v2164, %v2156
          %v2189 = vpack.c.bf16 %v2165, %v2157
          %v2190 = vpack.c.bf16 %v2166, %v2158
          %v2191 = vpack.c.bf16 %v2167, %v2159
          %v2192 = vpack.c.bf16 %v2168, %v2160
          %v2193 = vpack.c.bf16 %v2169, %v2161
          %v2194 = vpack.c.bf16 %v2178, %v2170
          %v2195 = vpack.c.bf16 %v2179, %v2171
          %v2196 = vpack.c.bf16 %v2180, %v2172
          %v2197 = vpack.c.bf16 %v2181, %v2173
          %v2198 = vpack.c.bf16 %v2182, %v2174
          %v2199 = vpack.c.bf16 %v2183, %v2175
          %v2200 = vpack.c.bf16 %v2184, %v2176
          %v2201 = vpack.c.bf16 %v2185, %v2177
          %v2206 = vunpack.c.l.b16 %v283
          %v2207 = vunpack.c.l.b16 %v284
          %v2208 = vunpack.c.l.b16 %v285
          %v2209 = vunpack.c.l.b16 %v286
          %v2210 = vpack.c.b16 %v2207, %v2206
          %v2211 = vpack.c.b16 %v2209, %v2208
          %v2213 = vsel %vm501, %v2210, 0
          %v2216 = vsel %vm501, %v2211, 0
          %2218 = vmatprep.subr.bf16.mxu0 %v2187
          %2219 = vmatpush1.bf16.msra.mxu0 %v2186
          %2220 = vmatprep.subr.bf16.mxu0 %v2195
          %2221 = vmatpush1.bf16.msra.mxu0 %v2194
          %2222 = vmatprep.subr.bf16.mxu0 0
          %2223 = vmatpush1.bf16.msra.mxu0 0
          %2224 = vmatprep.subr.bf16.mxu0 0
          %2225 = vmatpush1.bf16.msra.mxu0 0
          %2226 = vmatprep.subr.bf16.mxu0 0
          %2227 = vmatpush1.bf16.msra.mxu0 0
          %2228 = vmatprep.subr.bf16.mxu0 0
          %2229 = vmatpush1.bf16.msra.mxu0 0
          %2230 = vmatprep.subr.bf16.mxu0 0
          %2231 = vmatpush1.bf16.msra.mxu0 0
          %2232 = vmatprep.subr.bf16.mxu0 0
          %2233 = vmatpush1.bf16.msra.mxu0 0
          %2234 = vmatprep.subr.bf16.mxu0 0
          %2235 = vmatpush1.bf16.msra.mxu0 0
          %2236 = vmatprep.subr.bf16.mxu0 0
          %2237 = vmatpush1.bf16.msra.mxu0 0
          %2238 = vmatprep.subr.bf16.mxu0 0
          %2239 = vmatpush1.bf16.msra.mxu0 0
          %2240 = vmatprep.subr.bf16.mxu0 0
          %2241 = vmatpush1.bf16.msra.mxu0 0
          %2242 = vmatprep.subr.bf16.mxu0 0
          %2243 = vmatpush1.bf16.msra.mxu0 0
          %2244 = vmatprep.subr.bf16.mxu0 0
          %2245 = vmatpush1.bf16.msra.mxu0 0
          %2246 = vmatprep.subr.bf16.mxu0 0
          %2247 = vmatpush1.bf16.msra.mxu0 0
          %2248 = vmatprep.subr.bf16.mxu0 0
          %2249 = vmatpush1.bf16.msra.mxu0 0
          %2250 = vmatprep.mubr.bf16.mxu0 0
          %2251 = vmatmul.mubr.bf16.gmra.mrb[0].mxu0 %v2213
          %v2252 = vpop.f32.mrb[0].mxu0
          %v2253 = vadd.f32 %v352, %v2252
          %v2254 = vpop.f32.mrb[0].mxu0
          %v2255 = vadd.f32 %v352, %v2254
          %v2256 = vpop.f32.mrb[0].mxu0
          %v2257 = vadd.f32 %v357, %v2256
          %v2258 = vpop.f32.mrb[0].mxu0
          %v2259 = vadd.f32 %v357, %v2258
          %2260 = vmatprep.mubr.bf16.mxu0 0
          %2261 = vmatmul.mubr.bf16.gmra.mrb[0].mxu0 %v2216
          %v2262 = vpop.f32.mrb[0].mxu0
          %v2263 = vadd.f32 %v362, %v2262
          %v2264 = vpop.f32.mrb[0].mxu0
          %v2265 = vadd.f32 %v362, %v2264
          %v2266 = vpop.f32.mrb[0].mxu0
          %v2267 = vadd.f32 %v367, %v2266
          %v2268 = vpop.f32.mrb[0].mxu0
          %v2269 = vadd.f32 %v367, %v2268
          %2270 = vdwg.mxu0
          %2271 = vmatprep.subr.bf16.mxu0 %v2189
          %2272 = vmatpush1.bf16.msra.mxu0 %v2188
          %2273 = vmatprep.subr.bf16.mxu0 %v2197
          %2274 = vmatpush1.bf16.msra.mxu0 %v2196
          %2275 = vmatprep.subr.bf16.mxu0 0
          %2276 = vmatpush1.bf16.msra.mxu0 0
          %2277 = vmatprep.subr.bf16.mxu0 0
          %2278 = vmatpush1.bf16.msra.mxu0 0
          %2279 = vmatprep.subr.bf16.mxu0 0
          %2280 = vmatpush1.bf16.msra.mxu0 0
          %2281 = vmatprep.subr.bf16.mxu0 0
          %2282 = vmatpush1.bf16.msra.mxu0 0
          %2283 = vmatprep.subr.bf16.mxu0 0
          %2284 = vmatpush1.bf16.msra.mxu0 0
          %2285 = vmatprep.subr.bf16.mxu0 0
          %2286 = vmatpush1.bf16.msra.mxu0 0
          %2287 = vmatprep.subr.bf16.mxu0 0
          %2288 = vmatpush1.bf16.msra.mxu0 0
          %2289 = vmatprep.subr.bf16.mxu0 0
          %2290 = vmatpush1.bf16.msra.mxu0 0
          %2291 = vmatprep.subr.bf16.mxu0 0
          %2292 = vmatpush1.bf16.msra.mxu0 0
          %2293 = vmatprep.subr.bf16.mxu0 0
          %2294 = vmatpush1.bf16.msra.mxu0 0
          %2295 = vmatprep.subr.bf16.mxu0 0
          %2296 = vmatpush1.bf16.msra.mxu0 0
          %2297 = vmatprep.subr.bf16.mxu0 0
          %2298 = vmatpush1.bf16.msra.mxu0 0
          %2299 = vmatprep.subr.bf16.mxu0 0
          %2300 = vmatpush1.bf16.msra.mxu0 0
          %2301 = vmatprep.subr.bf16.mxu0 0
          %2302 = vmatpush1.bf16.msra.mxu0 0
          %2303 = vmatprep.mubr.bf16.mxu0 0
          %2304 = vmatmul.mubr.bf16.gmra.mrb[0].mxu0 %v2213
          %v2305 = vpop.f32.mrb[0].mxu0
          %v2306 = vadd.f32 %v352, %v2305
          %v2307 = vpop.f32.mrb[0].mxu0
          %v2308 = vadd.f32 %v352, %v2307
          %v2309 = vpop.f32.mrb[0].mxu0
          %v2310 = vadd.f32 %v357, %v2309
          %v2311 = vpop.f32.mrb[0].mxu0
          %v2312 = vadd.f32 %v357, %v2311
          %2313 = vmatprep.mubr.bf16.mxu0 0
          %2314 = vmatmul.mubr.bf16.gmra.mrb[0].mxu0 %v2216
          %v2315 = vpop.f32.mrb[0].mxu0
          %v2316 = vadd.f32 %v362, %v2315
          %v2317 = vpop.f32.mrb[0].mxu0
          %v2318 = vadd.f32 %v362, %v2317
          %v2319 = vpop.f32.mrb[0].mxu0
          %v2320 = vadd.f32 %v367, %v2319
          %v2321 = vpop.f32.mrb[0].mxu0
          %v2322 = vadd.f32 %v367, %v2321
          %2323 = vdwg.mxu0
          %2324 = vmatprep.subr.bf16.mxu0 %v2191
          %2325 = vmatpush1.bf16.msra.mxu0 %v2190
          %2326 = vmatprep.subr.bf16.mxu0 %v2199
          %2327 = vmatpush1.bf16.msra.mxu0 %v2198
          %2328 = vmatprep.subr.bf16.mxu0 0
          %2329 = vmatpush1.bf16.msra.mxu0 0
          %2330 = vmatprep.subr.bf16.mxu0 0
          %2331 = vmatpush1.bf16.msra.mxu0 0
          %2332 = vmatprep.subr.bf16.mxu0 0
          %2333 = vmatpush1.bf16.msra.mxu0 0
          %2334 = vmatprep.subr.bf16.mxu0 0
          %2335 = vmatpush1.bf16.msra.mxu0 0
          %2336 = vmatprep.subr.bf16.mxu0 0
          %2337 = vmatpush1.bf16.msra.mxu0 0
          %2338 = vmatprep.subr.bf16.mxu0 0
          %2339 = vmatpush1.bf16.msra.mxu0 0
          %2340 = vmatprep.subr.bf16.mxu0 0
          %2341 = vmatpush1.bf16.msra.mxu0 0
          %2342 = vmatprep.subr.bf16.mxu0 0
          %2343 = vmatpush1.bf16.msra.mxu0 0
          %2344 = vmatprep.subr.bf16.mxu0 0
          %2345 = vmatpush1.bf16.msra.mxu0 0
          %2346 = vmatprep.subr.bf16.mxu0 0
          %2347 = vmatpush1.bf16.msra.mxu0 0
          %2348 = vmatprep.subr.bf16.mxu0 0
          %2349 = vmatpush1.bf16.msra.mxu0 0
          %2350 = vmatprep.subr.bf16.mxu0 0
          %2351 = vmatpush1.bf16.msra.mxu0 0
          %2352 = vmatprep.subr.bf16.mxu0 0
          %2353 = vmatpush1.bf16.msra.mxu0 0
          %2354 = vmatprep.subr.bf16.mxu0 0
          %2355 = vmatpush1.bf16.msra.mxu0 0
          %2356 = vmatprep.mubr.bf16.mxu0 0
          %2357 = vmatmul.mubr.bf16.gmra.mrb[0].mxu0 %v2213
          %v2358 = vpop.f32.mrb[0].mxu0
          %v2359 = vadd.f32 %v352, %v2358
          %v2360 = vpop.f32.mrb[0].mxu0
          %v2361 = vadd.f32 %v352, %v2360
          %v2362 = vpop.f32.mrb[0].mxu0
          %v2363 = vadd.f32 %v357, %v2362
          %v2364 = vpop.f32.mrb[0].mxu0
          %v2365 = vadd.f32 %v357, %v2364
          %2366 = vmatprep.mubr.bf16.mxu0 0
          %2367 = vmatmul.mubr.bf16.gmra.mrb[0].mxu0 %v2216
          %v2368 = vpop.f32.mrb[0].mxu0
          %v2369 = vadd.f32 %v362, %v2368
          %v2370 = vpop.f32.mrb[0].mxu0
          %v2371 = vadd.f32 %v362, %v2370
          %v2372 = vpop.f32.mrb[0].mxu0
          %v2373 = vadd.f32 %v367, %v2372
          %v2374 = vpop.f32.mrb[0].mxu0
          %v2375 = vadd.f32 %v367, %v2374
          %2376 = vdwg.mxu0
          %2377 = vmatprep.subr.bf16.mxu0 %v2193
          %2378 = vmatpush1.bf16.msra.mxu0 %v2192
          %2379 = vmatprep.subr.bf16.mxu0 %v2201
          %2380 = vmatpush1.bf16.msra.mxu0 %v2200
          %2381 = vmatprep.subr.bf16.mxu0 0
          %2382 = vmatpush1.bf16.msra.mxu0 0
          %2383 = vmatprep.subr.bf16.mxu0 0
          %2384 = vmatpush1.bf16.msra.mxu0 0
          %2385 = vmatprep.subr.bf16.mxu0 0
          %2386 = vmatpush1.bf16.msra.mxu0 0
          %2387 = vmatprep.subr.bf16.mxu0 0
          %2388 = vmatpush1.bf16.msra.mxu0 0
          %2389 = vmatprep.subr.bf16.mxu0 0
          %2390 = vmatpush1.bf16.msra.mxu0 0
          %2391 = vmatprep.subr.bf16.mxu0 0
          %2392 = vmatpush1.bf16.msra.mxu0 0
          %2393 = vmatprep.subr.bf16.mxu0 0
          %2394 = vmatpush1.bf16.msra.mxu0 0
          %2395 = vmatprep.subr.bf16.mxu0 0
          %2396 = vmatpush1.bf16.msra.mxu0 0
          %2397 = vmatprep.subr.bf16.mxu0 0
          %2398 = vmatpush1.bf16.msra.mxu0 0
          %2399 = vmatprep.subr.bf16.mxu0 0
          %2400 = vmatpush1.bf16.msra.mxu0 0
          %2401 = vmatprep.subr.bf16.mxu0 0
          %2402 = vmatpush1.bf16.msra.mxu0 0
          %2403 = vmatprep.subr.bf16.mxu0 0
          %2404 = vmatpush1.bf16.msra.mxu0 0
          %2405 = vmatprep.subr.bf16.mxu0 0
          %2406 = vmatpush1.bf16.msra.mxu0 0
          %2407 = vmatprep.subr.bf16.mxu0 0
          %2408 = vmatpush1.bf16.msra.mxu0 0
          %2409 = vmatprep.mubr.bf16.mxu0 0
          %2410 = vmatmul.mubr.bf16.gmra.mrb[0].mxu0 %v2213
          %v2411 = vpop.f32.mrb[0].mxu0
          %v2412 = vadd.f32 %v352, %v2411
          %v2413 = vpop.f32.mrb[0].mxu0
          %v2414 = vadd.f32 %v352, %v2413
          %v2415 = vpop.f32.mrb[0].mxu0
          %v2416 = vadd.f32 %v357, %v2415
          %v2417 = vpop.f32.mrb[0].mxu0
          %v2418 = vadd.f32 %v357, %v2417
          %2419 = vmatprep.mubr.bf16.mxu0 0
          %2420 = vmatmul.mubr.bf16.gmra.mrb[0].mxu0 %v2216
          %v2421 = vpop.f32.mrb[0].mxu0
          %v2422 = vadd.f32 %v362, %v2421
          %v2423 = vpop.f32.mrb[0].mxu0
          %v2424 = vadd.f32 %v362, %v2423
          %v2425 = vpop.f32.mrb[0].mxu0
          %v2426 = vadd.f32 %v367, %v2425
          %v2427 = vpop.f32.mrb[0].mxu0
          %v2428 = vadd.f32 %v367, %v2427
          %2429 = vdwg.mxu0
          %s2430 = smul.addr %s379, 8
          %s2431 = scalar_lea.vmem %s270, %s2430 [#allocation5]
          %2432 = vst [vmem:[%s2431] sm:$0xff] %v2253
          %2433 = vst [vmem:[%s2431 + $0x8] sm:$0xff] %v2255
          %2434 = vst [vmem:[%s2431 + $0x10] sm:$0xff] %v2306
          %2435 = vst [vmem:[%s2431 + $0x18] sm:$0xff] %v2308
          %2436 = vst [vmem:[%s2431 + $0x20] sm:$0xff] %v2359
          %2437 = vst [vmem:[%s2431 + $0x28] sm:$0xff] %v2361
          %2438 = vst [vmem:[%s2431 + $0x30] sm:$0xff] %v2412
          %2439 = vst [vmem:[%s2431 + $0x38] sm:$0xff] %v2414
          %2440 = vst [vmem:[%s2431 + $0x40] sm:$0xff] %v2257
          %2441 = vst [vmem:[%s2431 + $0x48] sm:$0xff] %v2259
          %2442 = vst [vmem:[%s2431 + $0x50] sm:$0xff] %v2310
          %2443 = vst [vmem:[%s2431 + $0x58] sm:$0xff] %v2312
          %2444 = vst [vmem:[%s2431 + $0x60] sm:$0xff] %v2363
          %2445 = vst [vmem:[%s2431 + $0x68] sm:$0xff] %v2365
          %2446 = vst [vmem:[%s2431 + $0x70] sm:$0xff] %v2416
          %2447 = vst [vmem:[%s2431 + $0x78] sm:$0xff] %v2418
          %2448 = vst [vmem:[%s2431 + $0x80] sm:$0xff] %v2263
          %2449 = vst [vmem:[%s2431 + $0x88] sm:$0xff] %v2265
          %2450 = vst [vmem:[%s2431 + $0x90] sm:$0xff] %v2316
          %2451 = vst [vmem:[%s2431 + $0x98] sm:$0xff] %v2318
          %2452 = vst [vmem:[%s2431 + $0xa0] sm:$0xff] %v2369
          %2453 = vst [vmem:[%s2431 + $0xa8] sm:$0xff] %v2371
          %2454 = vst [vmem:[%s2431 + $0xb0] sm:$0xff] %v2422
          %2455 = vst [vmem:[%s2431 + $0xb8] sm:$0xff] %v2424
          %2456 = vst [vmem:[%s2431 + $0xc0] sm:$0xff] %v2267
          %2457 = vst [vmem:[%s2431 + $0xc8] sm:$0xff] %v2269
          %2458 = vst [vmem:[%s2431 + $0xd0] sm:$0xff] %v2320
          %2459 = vst [vmem:[%s2431 + $0xd8] sm:$0xff] %v2322
          %2460 = vst [vmem:[%s2431 + $0xe0] sm:$0xff] %v2373
          %2461 = vst [vmem:[%s2431 + $0xe8] sm:$0xff] %v2375
          %2462 = vst [vmem:[%s2431 + $0xf0] sm:$0xff] %v2426
          %2463 = vst [vmem:[%s2431 + $0xf8] sm:$0xff] %v2428
        $region53: #{tpu_custom_call.1} parent=43 // loop_footer
          %s376 = sadd.s32 %s374, 1
        $region54: #{tpu_custom_call.1} parent=43 // loop_footer_branch
          %373 = sbr.rel target = $region50
        $region55: #{tpu_custom_call.1} parent=43 // loop_exit
          _
        %s2464 = sand.u32 %s162, 1
        %s2465 = scalar_lea.sflag [#allocation4], %s2464
        %s2466 = sand.u32 %s162, 1
        %s2467 = smul.addr %s2466, 512
        %s2468 = scalar_lea.vmem [#allocation5], %s2467
        // Predicated region
        $region56: #{tpu_custom_call.1} parent=43 // pred_check
          %p2469 = pneg %p172
        $region57: #{tpu_custom_call.1} parent=43 // pred_check_branch
          %2471 = sbr.rel (%p2469) target = $region59
        $region58: #{tpu_custom_call.1} parent=43 // pred_region
          %s2472 = smul.u32 2, %s23
          %s2474 = ssub.s32 8192, 8192
          %2475 = vsyncadd %s2465, %s2474
          %s2476 = smul.addr %s2472, 32
          %s2477 = smul.addr %s2476, 128
          %s2478 = scalar_lea.hbm %s6, %s2477
          %s2479 = sshll.u32 %s2468, 4
          %s2480 = int_to_ptr.vmem [resolvable:$true] %s2479
          %2485 = dma.vmem_to_hbm [thread:$0]  %s2480, 8192, %s2478, %s2465, 1024, 1024, 64
        $region59: #{tpu_custom_call.1} parent=43 // pred_fallthru
          _
      $region44: #{tpu_custom_call.1} parent=5 // pred_fallthru
        _
      %p2486 = scmp.le.s32.totalorder 2, %s18
      // Predicated region
      $region60: #{tpu_custom_call.1} parent=5 // pred_check
        %p2487 = pneg %p2486
      $region61: #{tpu_custom_call.1} parent=5 // pred_check_branch
        %2489 = sbr.rel (%p2487) target = $region63
      $region62: #{tpu_custom_call.1} parent=5 // pred_region
        %s2490 = ssub.s32 %s18, 2
        // Predicated region
        $region64: #{tpu_custom_call.1} parent=62 // pred_check
          %p2491 = pneg %p178
        $region65: #{tpu_custom_call.1} parent=62 // pred_check_branch
          %2493 = sbr.rel (%p2491) target = $region67
        $region66: #{tpu_custom_call.1} parent=62 // pred_region
          %s2494 = sand.u32 %s163, 1
          %s2495 = scalar_lea.sflag [#allocation4], %s2494
          %s2496 = sand.u32 %s163, 1
          %s2497 = smul.addr %s2496, 512
          %s2498 = scalar_lea.vmem [#allocation5], %s2497
          %2499 = dma.done %s2495, 8192
        $region67: #{tpu_custom_call.1} parent=62 // pred_fallthru
          _
      $region63: #{tpu_custom_call.1} parent=5 // pred_fallthru
        _
    $region6: #{tpu_custom_call.1} parent=1 // loop_footer
      %s22 = sadd.s32 1, %s18
    $region7: #{tpu_custom_call.1} parent=1 // loop_footer_branch
      %17 = sbr.rel target = $region3
    $region8: #{tpu_custom_call.1} parent=1 // loop_exit
      _
    %2500 = vsyncpa [#allocation3], 1
    %s2501 = scalar_lea.sflag [#allocation3], 1
    %2502 = vsyncpa %s2501, 1
    %2503 = vsyncpa [#allocation4], 1
    %s2504 = scalar_lea.sflag [#allocation4], 1
    %2505 = vsyncpa %s2504, 1

</llo_original>
